<compile_context>
chip_gen: v7x
topology: tpu7x:2x2x1
jax: 0.10.0
libtpu: 0.0.40
codegen_flags: <defaults>
</compile_context>

<pallas_src>
import functools

import jax
import jax.numpy as jnp
from jax import lax
from jax.experimental import pallas as pl
from jax.experimental.pallas import tpu as pltpu


def _round_up(x, m):
    return ((x + m - 1) // m) * m


def _clifford_literal_kernel(xe_ref, xa_ref, w_ref, aff_ref, cb_ref, out_ref):
    f32 = jnp.float32
    d = xe_ref.shape[-1]

    aff = aff_ref[...]                       # (4, 2D) f32: bias/gamma/beta/v_comb
    bias = aff[0:1, :]
    gamma = aff[1:2, :]
    beta = aff[2:3, :]
    v_comb = aff[3:4, :]

    # ---- clif_1: fused CliffordLinear(g=[-1]), blade-interleaved output -----
    # Two K=D matmuls accumulated in f32 (bf16 operands hit the MXU natively).
    # NOTE: merging into one K=2D matmul (contiguous (tb, 2D) scratch) is a
    # secondary win that only matters once the kernel stops being HBM-bound.
    h = (jnp.dot(xe_ref[...], w_ref[0:d, :], preferred_element_type=f32)
         + jnp.dot(xa_ref[...], w_ref[d:, :], preferred_element_type=f32)
         + bias)                             # (tb, 2D), f32 accumulation

    # ---- LayerNorm over [in_channels, n_blades] == whole 2D axis, one pass --
    n = h.shape[-1]
    inv_n = 1.0 / n
    s1 = jnp.sum(h, axis=-1, keepdims=True)
    s2 = jnp.sum(h * h, axis=-1, keepdims=True)
    mu = s1 * inv_n
    var = s2 * inv_n - mu * mu               # f32 throughout -> within tolerance
    z = (h - mu) * lax.rsqrt(var + 1e-5) * gamma + beta   # eps = PyTorch default

    # ---- ReLU; dropout(p=0.15) is eval-mode identity -------------------------
    # TODO(synk): dropout implemented as eval-mode identity (inference-only).
    z = jnp.maximum(z, 0.0)

    # ---- folded output layer: 0.5*(o0+o1) = v_comb . z + 0.5*(cb0+cb1) -------
    # Flash-style NT contraction (both operands contracted on their minor dim):
    # the MXU consumes z as-is, no transpose, and the (1, tb) row is lane-dense.
    row = lax.dot_general(v_comb, z, (((1,), (1,)), ((), ())),
                          preferred_element_type=f32)
    out_ref[...] = row + cb_ref[0, 0]


def fuse_params(p, *, matmul_dtype=jnp.bfloat16):
    """One-time pre-folding of the module parameters into kernel-friendly slabs.

    Embedding tables and the fused Clifford weight are stored in `matmul_dtype`
    (bf16 by default -> half-width HBM streams, native MXU dtype); the affine /
    output parameters stay f32 since the epilogue runs in f32.
    """
    D = p["w0"].shape[0]

    # Fused (2D, 2D) Clifford weight: row index = tuple_emb column (2c+blade_in),
    # column index = interleaved output feature (2j+blade_out).
    wr = jnp.zeros((D, 2, D, 2), jnp.float32)
    wr = wr.at[:, 0, :, 0].set(p["w0"])      # x0 -> h0
    wr = wr.at[:, 1, :, 0].set(-p["w1"])     # x1 -> h0
    wr = wr.at[:, 0, :, 1].set(p["w1"])      # x0 -> h1
    wr = wr.at[:, 1, :, 1].set(p["w0"])      # x1 -> h1
    w_big = wr.reshape(2 * D, 2 * D).astype(matmul_dtype)
    # NOTE: for very large D (>= ~1536) on v7x (64 MiB VMEM) w_big should be
    # K-tiled over an extra "arbitrary" grid axis with an f32 accumulator and
    # the LN/ReLU/output epilogue under pl.when(k == last).

    def interleave(a, b):                    # (1, D), (1, D) -> (1, 2D) blade-minor
        return jnp.stack([a[0], b[0]], axis=-1).reshape(1, 2 * D)

    bias = interleave(p["b0"], p["b1"])
    gamma = interleave(p["gamma0"], p["gamma1"])
    beta = interleave(p["beta0"], p["beta1"])

    v0, v1 = p["v0"][:, 0], p["v1"][:, 0]
    v_comb = (0.5 * jnp.stack([v0 + v1, v0 - v1], axis=-1)).reshape(1, 2 * D)

    aff = jnp.concatenate([bias, gamma, beta, v_comb], axis=0).astype(jnp.float32)
    cb = (0.5 * (p["out_bias"][0, 0] + p["out_bias"][0, 1])
          ).reshape(1, 1).astype(jnp.float32)

    return {"entity_emb": p["entity_emb"].astype(matmul_dtype),
            "attr_emb": p["attr_emb"].astype(matmul_dtype),
            "w_big": w_big, "aff": aff, "cb": cb}


def literal_embeddings_clifford_forward(entity_idx, attr_idx, fused, *,
                                        tb=1024, single_buffer_consts=True):
    """Embedding gathers in the wrapper, everything else fused in one kernel."""
    ent_tab = fused["entity_emb"]
    attr_tab = fused["attr_emb"]
    w_big = fused["w_big"]
    aff = fused["aff"]
    cb = fused["cb"]
    D = ent_tab.shape[1]
    in_itemsize = ent_tab.dtype.itemsize
    B = entity_idx.shape[0]

    # ---- batch-tile selection ------------------------------------------------
    # Lane-dense (multiple-of-128) tiles; force >= 2 grid steps when the batch
    # allows it so v7x's two TensorCores both get work under "parallel".
    tb_req = max(128, (int(tb) // 128) * 128)
    min_blocks = 2 if B >= 256 else 1
    tb_eff = min(tb_req, max(128, _round_up(pl.cdiv(B, min_blocks), 128)))

    # ---- explicit VMEM budget (per-generation) --------------------------------
    try:
        vmem_cap = pltpu.get_tpu_info().vmem_capacity_bytes
        vmem_budget = min(int(0.75 * vmem_cap), 100 << 20)
    except Exception:
        vmem_budget = 48 << 20               # safe on v5e/v6e/v7x
    w_copies = 1 if single_buffer_consts else 2

    def vmem_estimate(t):
        rows = 2 * 2 * t * D * in_itemsize           # e/a input double buffers
        outs = 2 * 8 * t * 4                          # (1, t) out blocks, padded
        consts = w_copies * w_big.size * in_itemsize + 2 * aff.size * 4
        inter = 4 * t * 2 * D * 4                     # h/z/LN temporaries (f32)
        return rows + outs + consts + inter

    while tb_eff > 128 and vmem_estimate(tb_eff) > vmem_budget:
        tb_eff = max(128, ((tb_eff // 2) // 128) * 128)

    nblk = pl.cdiv(B, tb_eff)
    b_pad = nblk * tb_eff

    # Pad the *indices* (cheap) so every block is fully valid: no ragged-block
    # garbage ever reaches LayerNorm, and all loads/stores are unmasked.
    e_idx = jnp.pad(entity_idx, (0, b_pad - B))
    a_idx = jnp.pad(attr_idx, (0, b_pad - B))

    # Embedding lookups (XLA gather) — tables are stored in the matmul dtype
    # (bf16 by default) so the dominant HBM streams are half width.
    # TODO(synk): the gathered (B, D) rows still round-trip HBM; fusing the
    # gather into the kernel (scalar-prefetched indices + per-row DMA, or
    # allow_input_fusion) would cut that traffic further but is only worthwhile
    # once D*itemsize reaches a few hundred bytes per row.
    e_emb = jnp.take(ent_tab, e_idx, axis=0)          # (b_pad, D)
    a_emb = jnp.take(attr_tab, a_idx, axis=0)         # (b_pad, D)

    row_spec = pl.BlockSpec((tb_eff, D), lambda i: (i, 0))
    const_kwargs = {"pipeline_mode": pl.Buffered(1)} if single_buffer_consts else {}
    const = lambda arr: pl.BlockSpec(arr.shape, lambda i: (0, 0), **const_kwargs)

    out = pl.pallas_call(
        _clifford_literal_kernel,
        out_shape=jax.ShapeDtypeStruct((1, b_pad), jnp.float32),
        grid=(nblk,),
        in_specs=[
            row_spec, row_spec,                       # e_emb rows, a_emb rows
            const(w_big),                             # fused (2D, 2D) weight
            const(aff),                               # (4, 2D) bias/gamma/beta/v
            pl.BlockSpec(memory_space=pltpu.MemorySpace.SMEM),   # out-bias scalar
        ],
        out_specs=pl.BlockSpec((1, tb_eff), lambda i: (0, i)),
        compiler_params=pltpu.CompilerParams(
            dimension_semantics=("parallel",),
            vmem_limit_bytes=int(vmem_budget)),
    )(e_emb, a_emb, w_big, aff, cb)

    return out[0, :B]                        # .mean(dim=-1).flatten() -> (B,)


def reference_forward(entity_idx, attr_idx, p):
    """Pure-JAX reference with the original (unfused) math, for correctness."""
    D = p["entity_emb"].shape[1]
    e = jnp.take(p["entity_emb"], entity_idx, axis=0)
    a = jnp.take(p["attr_emb"], attr_idx, axis=0)
    x = jnp.concatenate([e, a], axis=1).reshape(-1, D, 2)
    x0, x1 = x[..., 0], x[..., 1]
    h0 = x0 @ p["w0"] - x1 @ p["w1"] + p["b0"]
    h1 = x0 @ p["w1"] + x1 @ p["w0"] + p["b1"]
    h = jnp.stack([h0, h1], axis=-1)                   # (B, D, 2)
    mu = jnp.mean(h, axis=(1, 2), keepdims=True)
    var = jnp.mean((h - mu) ** 2, axis=(1, 2), keepdims=True)
    gamma = jnp.stack([p["gamma0"][0], p["gamma1"][0]], axis=-1)
    beta = jnp.stack([p["beta0"][0], p["beta1"][0]], axis=-1)
    z = jnp.maximum((h - mu) / jnp.sqrt(var + 1e-5) * gamma + beta, 0.0)
    z0, z1 = z[..., 0], z[..., 1]
    o0 = z0 @ p["v0"] - z1 @ p["v1"] + p["out_bias"][0, 0]
    o1 = z0 @ p["v1"] + z1 @ p["v0"] + p["out_bias"][0, 1]
    return (0.5 * (o0 + o1))[:, 0]


def init_params(key, num_entities, num_props, D):
    ks = jax.random.split(key, 8)
    scale = 1.0 / jnp.sqrt(jnp.float32(D))
    return {
        # pretrained entity embeddings + nn.Embedding data-property embeddings
        "entity_emb": jax.random.normal(ks[0], (num_entities, D), jnp.float32),
        "attr_emb": jax.random.normal(ks[1], (num_props, D), jnp.float32),
        # clif_1: blade-split weights stored transposed as (in, out)
        "w0": jax.random.uniform(ks[2], (D, D), jnp.float32, -scale, scale),
        "w1": jax.random.uniform(ks[3], (D, D), jnp.float32, -scale, scale),
        "b0": jax.random.uniform(ks[4], (1, D), jnp.float32, -scale, scale),
        "b1": jax.random.uniform(ks[5], (1, D), jnp.float32, -scale, scale),
        # LayerNorm([in_channels, n_blades]) affine params (PyTorch default init)
        "gamma0": jnp.ones((1, D), jnp.float32),
        "gamma1": jnp.ones((1, D), jnp.float32),
        "beta0": jnp.zeros((1, D), jnp.float32),
        "beta1": jnp.zeros((1, D), jnp.float32),
        # out: CliffordLinear(D -> 1): blade-split columns (D, 1)
        "v0": jax.random.uniform(ks[6], (D, 1), jnp.float32, -scale, scale),
        "v1": jax.random.uniform(ks[7], (D, 1), jnp.float32, -scale, scale),
        "out_bias": jnp.array([[0.01, -0.02]], jnp.float32),
        # NOTE: final_proj and gated_residual_proj are unused in forward()
        # (gate_residual=False default), so they are intentionally omitted.
    }


if __name__ == "__main__":
    B = 8                     # batch
    D = 32                    # embedding_dims == in_channels (n_blades=2, hidden=2D)
    NUM_ENTITIES = 10
    NUM_PROPS = 4

    key = jax.random.PRNGKey(0)
    pkey, ikey, akey = jax.random.split(key, 3)
    params = init_params(pkey, NUM_ENTITIES, NUM_PROPS, D)

    entity_idx = jax.random.randint(ikey, (B,), 0, NUM_ENTITIES, dtype=jnp.int32)
    attr_idx = jax.random.randint(akey, (B,), 0, NUM_PROPS, dtype=jnp.int32)

    ref = reference_forward(entity_idx, attr_idx, params)

    def run(fused_dict, sbc):
        fwd = jax.jit(functools.partial(literal_embeddings_clifford_forward,
                                        fused=fused_dict,
                                        single_buffer_consts=sbc))
        return jax.block_until_ready(fwd(entity_idx, attr_idx))

    # f32 path: strict correctness check against the unfused reference.
    fused_f32 = fuse_params(params, matmul_dtype=jnp.float32)
    single_buffer = True
    try:
        out_f32 = run(fused_f32, single_buffer)
    except Exception:
        # Fallback if this jax build rejects pipeline_mode=pl.Buffered(1).
        single_buffer = False
        out_f32 = run(fused_f32, single_buffer)
    assert out_f32.shape == (B,), out_f32.shape
    assert jnp.allclose(out_f32, ref, atol=1e-4, rtol=1e-4), (out_f32, ref)

    # bf16 default path: half-width HBM streams; looser tolerance for bf16 matmuls.
    fused_bf16 = fuse_params(params)          # matmul_dtype defaults to bf16
    out_bf16 = run(fused_bf16, single_buffer)
    assert out_bf16.shape == (B,), out_bf16.shape
    assert jnp.allclose(out_bf16, ref, atol=5e-2, rtol=5e-2), (out_bf16, ref)

    print("KERNEL_OK")
</pallas_src>

<mosaic_0001>
module attributes {stable_mosaic.version = 11 : i64} {
  func.func @_clifford_literal_kernel(%arg0: i32, %arg1: memref<128x32xf32, #tpu.memory_space<vmem>>, %arg2: memref<128x32xf32, #tpu.memory_space<vmem>>, %arg3: memref<64x64xf32, #tpu.memory_space<vmem>>, %arg4: memref<4x64xf32, #tpu.memory_space<vmem>>, %arg5: memref<1x1xf32, #tpu.memory_space<smem>>, %arg6: memref<1x128xf32, #tpu.memory_space<vmem>>) attributes {dimension_semantics = [#tpu.dimension_semantics<parallel>], iteration_bounds = array<i64: 1>, scalar_prefetch = 0 : i64, scratch_operands = 0 : i64, tpu.core_type = #tpu.core_type<tc>, window_params = [{transform_indices = @transform_0, window_bounds = array<i64: 128, 32>}, {transform_indices = @transform_1, window_bounds = array<i64: 128, 32>}, {pipeline_mode = #tpu.pipeline_mode<synchronous>, transform_indices = @transform_2, window_bounds = array<i64: 64, 64>}, {pipeline_mode = #tpu.pipeline_mode<synchronous>, transform_indices = @transform_3, window_bounds = array<i64: 4, 64>}, {transform_indices = @transform_4, window_bounds = array<i64: 1, 1>}, {transform_indices = @transform_5, window_bounds = array<i64: 1, 128>}]} {
    %c0 = arith.constant 0 : index
    %c0_0 = arith.constant 0 : index
    %0 = vector.load %arg4[%c0, %c0_0] : memref<4x64xf32, #tpu.memory_space<vmem>>, vector<4x64xf32>
    %1 = vector.extract_strided_slice %0 {offsets = [0, 0], sizes = [1, 64], strides = [1, 1]} : vector<4x64xf32> to vector<1x64xf32>
    %2 = vector.extract_strided_slice %0 {offsets = [1, 0], sizes = [1, 64], strides = [1, 1]} : vector<4x64xf32> to vector<1x64xf32>
    %3 = vector.extract_strided_slice %0 {offsets = [2, 0], sizes = [1, 64], strides = [1, 1]} : vector<4x64xf32> to vector<1x64xf32>
    %4 = vector.extract_strided_slice %0 {offsets = [3, 0], sizes = [1, 64], strides = [1, 1]} : vector<4x64xf32> to vector<1x64xf32>
    %c0_1 = arith.constant 0 : index
    %c0_2 = arith.constant 0 : index
    %5 = vector.load %arg1[%c0_1, %c0_2] : memref<128x32xf32, #tpu.memory_space<vmem>>, vector<128x32xf32>
    %c0_3 = arith.constant 0 : index
    %c0_4 = arith.constant 0 : index
    %6 = vector.load %arg3[%c0_3, %c0_4] : memref<64x64xf32, #tpu.memory_space<vmem>>, vector<32x64xf32>
    %cst = arith.constant dense<0.000000e+00> : vector<128x64xf32>
    %7 = tpu.matmul %5, %6, %cst {dimension_numbers = #tpu.dot_dimension_numbers<[1], [0], [0], [1], [0, 0, 1, 1], [], []>} : vector<128x32xf32>, vector<32x64xf32>, vector<128x64xf32> -> vector<128x64xf32>
    %c0_5 = arith.constant 0 : index
    %c0_6 = arith.constant 0 : index
    %8 = vector.load %arg2[%c0_5, %c0_6] : memref<128x32xf32, #tpu.memory_space<vmem>>, vector<128x32xf32>
    %c32 = arith.constant 32 : index
    %c0_7 = arith.constant 0 : index
    %9 = vector.load %arg3[%c32, %c0_7] : memref<64x64xf32, #tpu.memory_space<vmem>>, vector<32x64xf32>
    %cst_8 = arith.constant dense<0.000000e+00> : vector<128x64xf32>
    %10 = tpu.matmul %8, %9, %cst_8 {dimension_numbers = #tpu.dot_dimension_numbers<[1], [0], [0], [1], [0, 0, 1, 1], [], []>} : vector<128x32xf32>, vector<32x64xf32>, vector<128x64xf32> -> vector<128x64xf32>
    %11 = arith.addf %7, %10 : vector<128x64xf32>
    %12 = vector.broadcast %1 : vector<1x64xf32> to vector<128x64xf32>
    %13 = arith.addf %11, %12 : vector<128x64xf32>
    %cst_9 = arith.constant dense<0.000000e+00> : vector<128xf32>
    %14 = vector.multi_reduction <add>, %13, %cst_9 [1] : vector<128x64xf32> to vector<128xf32>
    %15 = vector.shape_cast %14 : vector<128xf32> to vector<128x1xf32>
    %16 = arith.mulf %13, %13 : vector<128x64xf32>
    %cst_10 = arith.constant dense<0.000000e+00> : vector<128xf32>
    %17 = vector.multi_reduction <add>, %16, %cst_10 [1] : vector<128x64xf32> to vector<128xf32>
    %18 = vector.shape_cast %17 : vector<128xf32> to vector<128x1xf32>
    %cst_11 = arith.constant 1.562500e-02 : f32
    %19 = vector.broadcast %cst_11 : f32 to vector<128x1xf32>
    %20 = arith.mulf %15, %19 : vector<128x1xf32>
    %cst_12 = arith.constant 1.562500e-02 : f32
    %21 = vector.broadcast %cst_12 : f32 to vector<128x1xf32>
    %22 = arith.mulf %18, %21 : vector<128x1xf32>
    %23 = arith.mulf %20, %20 : vector<128x1xf32>
    %24 = arith.subf %22, %23 : vector<128x1xf32>
    %25 = vector.broadcast %20 : vector<128x1xf32> to vector<128x64xf32>
    %26 = arith.subf %13, %25 : vector<128x64xf32>
    %cst_13 = arith.constant 9.99999974E-6 : f32
    %27 = vector.broadcast %cst_13 : f32 to vector<128x1xf32>
    %28 = arith.addf %24, %27 : vector<128x1xf32>
    %29 = math.rsqrt %28 : vector<128x1xf32>
    %30 = vector.broadcast %29 : vector<128x1xf32> to vector<128x64xf32>
    %31 = arith.mulf %26, %30 : vector<128x64xf32>
    %32 = vector.broadcast %2 : vector<1x64xf32> to vector<128x64xf32>
    %33 = arith.mulf %31, %32 : vector<128x64xf32>
    %34 = vector.broadcast %3 : vector<1x64xf32> to vector<128x64xf32>
    %35 = arith.addf %33, %34 : vector<128x64xf32>
    %cst_14 = arith.constant 0.000000e+00 : f32
    %36 = vector.broadcast %cst_14 : f32 to vector<128x64xf32>
    %37 = arith.maximumf %35, %36 : vector<128x64xf32>
    %cst_15 = arith.constant dense<0.000000e+00> : vector<1x128xf32>
    %38 = tpu.matmul %4, %37, %cst_15 {dimension_numbers = #tpu.dot_dimension_numbers<[1], [1], [0], [0], [0, 0, 1, 0], [], []>} : vector<1x64xf32>, vector<128x64xf32>, vector<1x128xf32> -> vector<1x128xf32>
    %c0_16 = arith.constant 0 : index
    %c0_17 = arith.constant 0 : index
    %39 = memref.load %arg5[%c0_16, %c0_17] : memref<1x1xf32, #tpu.memory_space<smem>>
    %40 = vector.broadcast %39 : f32 to vector<1x128xf32>
    %41 = arith.addf %38, %40 : vector<1x128xf32>
    %c0_18 = arith.constant 0 : index
    %c0_19 = arith.constant 0 : index
    %42 = vector.load %arg6[%c0_18, %c0_19] : memref<1x128xf32, #tpu.memory_space<vmem>>, vector<1x128xf32>
    tpu.vector_store %arg6[%c0_18, %c0_19], %41 {strides = array<i32>} : memref<1x128xf32, #tpu.memory_space<vmem>>, vector<1x128xf32>,
    return
  }
  func.func @transform_0(%arg0: i32) -> (i32, i32) {
    %c0_i32 = arith.constant 0 : i32
    %c0_i32_0 = arith.constant 0 : i32
    return %arg0, %c0_i32 : i32, i32
  }
  func.func @transform_1(%arg0: i32) -> (i32, i32) {
    %c0_i32 = arith.constant 0 : i32
    %c0_i32_0 = arith.constant 0 : i32
    return %arg0, %c0_i32 : i32, i32
  }
  func.func @transform_2(%arg0: i32) -> (i32, i32) {
    %c0_i32 = arith.constant 0 : i32
    %c0_i32_0 = arith.constant 0 : i32
    %c0_i32_1 = arith.constant 0 : i32
    return %c0_i32, %c0_i32_0 : i32, i32
  }
  func.func @transform_3(%arg0: i32) -> (i32, i32) {
    %c0_i32 = arith.constant 0 : i32
    %c0_i32_0 = arith.constant 0 : i32
    %c0_i32_1 = arith.constant 0 : i32
    return %c0_i32, %c0_i32_0 : i32, i32
  }
  func.func @transform_4(%arg0: i32) -> (i32, i32) {
    %c0_i32 = arith.constant 0 : i32
    %c0_i32_0 = arith.constant 0 : i32
    %c0_i32_1 = arith.constant 0 : i32
    return %c0_i32, %c0_i32_0 : i32, i32
  }
  func.func @transform_5(%arg0: i32) -> (i32, i32) {
    %c0_i32 = arith.constant 0 : i32
    %c0_i32_0 = arith.constant 0 : i32
    return %c0_i32, %arg0 : i32, i32
  }
}

module attributes {stable_mosaic.version = 11 : i64} {
  func.func @_clifford_literal_kernel(%arg0: i32, %arg1: memref<128x32xf32, #tpu.memory_space<vmem>>, %arg2: memref<128x32xf32, #tpu.memory_space<vmem>>, %arg3: memref<64x64xf32, #tpu.memory_space<vmem>>, %arg4: memref<4x64xf32, #tpu.memory_space<vmem>>, %arg5: memref<1x1xf32, #tpu.memory_space<smem>>, %arg6: memref<1x128xf32, #tpu.memory_space<vmem>>) attributes {dimension_semantics = [#tpu.dimension_semantics<parallel>], iteration_bounds = array<i64: 1>, scalar_prefetch = 0 : i64, scratch_operands = 0 : i64, tpu.core_type = #tpu.core_type<tc>, window_params = [{transform_indices = @transform_0, window_bounds = array<i64: 128, 32>}, {transform_indices = @transform_1, window_bounds = array<i64: 128, 32>}, {pipeline_mode = #tpu.pipeline_mode<synchronous>, transform_indices = @transform_2, window_bounds = array<i64: 64, 64>}, {pipeline_mode = #tpu.pipeline_mode<synchronous>, transform_indices = @transform_3, window_bounds = array<i64: 4, 64>}, {transform_indices = @transform_4, window_bounds = array<i64: 1, 1>}, {transform_indices = @transform_5, window_bounds = array<i64: 1, 128>}]} {
    %c0 = arith.constant 0 : index
    %c0_0 = arith.constant 0 : index
    %0 = vector.load %arg4[%c0, %c0_0] : memref<4x64xf32, #tpu.memory_space<vmem>>, vector<4x64xf32>
    %1 = vector.extract_strided_slice %0 {offsets = [0, 0], sizes = [1, 64], strides = [1, 1]} : vector<4x64xf32> to vector<1x64xf32>
    %2 = vector.extract_strided_slice %0 {offsets = [1, 0], sizes = [1, 64], strides = [1, 1]} : vector<4x64xf32> to vector<1x64xf32>
    %3 = vector.extract_strided_slice %0 {offsets = [2, 0], sizes = [1, 64], strides = [1, 1]} : vector<4x64xf32> to vector<1x64xf32>
    %4 = vector.extract_strided_slice %0 {offsets = [3, 0], sizes = [1, 64], strides = [1, 1]} : vector<4x64xf32> to vector<1x64xf32>
    %c0_1 = arith.constant 0 : index
    %c0_2 = arith.constant 0 : index
    %5 = vector.load %arg1[%c0_1, %c0_2] : memref<128x32xf32, #tpu.memory_space<vmem>>, vector<128x32xf32>
    %c0_3 = arith.constant 0 : index
    %c0_4 = arith.constant 0 : index
    %6 = vector.load %arg3[%c0_3, %c0_4] : memref<64x64xf32, #tpu.memory_space<vmem>>, vector<32x64xf32>
    %cst = arith.constant dense<0.000000e+00> : vector<128x64xf32>
    %7 = tpu.matmul %5, %6, %cst {dimension_numbers = #tpu.dot_dimension_numbers<[1], [0], [0], [1], [0, 0, 1, 1], [], []>} : vector<128x32xf32>, vector<32x64xf32>, vector<128x64xf32> -> vector<128x64xf32>
    %c0_5 = arith.constant 0 : index
    %c0_6 = arith.constant 0 : index
    %8 = vector.load %arg2[%c0_5, %c0_6] : memref<128x32xf32, #tpu.memory_space<vmem>>, vector<128x32xf32>
    %c32 = arith.constant 32 : index
    %c0_7 = arith.constant 0 : index
    %9 = vector.load %arg3[%c32, %c0_7] : memref<64x64xf32, #tpu.memory_space<vmem>>, vector<32x64xf32>
    %cst_8 = arith.constant dense<0.000000e+00> : vector<128x64xf32>
    %10 = tpu.matmul %8, %9, %cst_8 {dimension_numbers = #tpu.dot_dimension_numbers<[1], [0], [0], [1], [0, 0, 1, 1], [], []>} : vector<128x32xf32>, vector<32x64xf32>, vector<128x64xf32> -> vector<128x64xf32>
    %11 = arith.addf %7, %10 : vector<128x64xf32>
    %12 = vector.broadcast %1 : vector<1x64xf32> to vector<128x64xf32>
    %13 = arith.addf %11, %12 : vector<128x64xf32>
    %cst_9 = arith.constant dense<0.000000e+00> : vector<128xf32>
    %14 = vector.multi_reduction <add>, %13, %cst_9 [1] : vector<128x64xf32> to vector<128xf32>
    %15 = vector.shape_cast %14 : vector<128xf32> to vector<128x1xf32>
    %16 = arith.mulf %13, %13 : vector<128x64xf32>
    %cst_10 = arith.constant dense<0.000000e+00> : vector<128xf32>
    %17 = vector.multi_reduction <add>, %16, %cst_10 [1] : vector<128x64xf32> to vector<128xf32>
    %18 = vector.shape_cast %17 : vector<128xf32> to vector<128x1xf32>
    %cst_11 = arith.constant 1.562500e-02 : f32
    %19 = vector.broadcast %cst_11 : f32 to vector<128x1xf32>
    %20 = arith.mulf %15, %19 : vector<128x1xf32>
    %cst_12 = arith.constant 1.562500e-02 : f32
    %21 = vector.broadcast %cst_12 : f32 to vector<128x1xf32>
    %22 = arith.mulf %18, %21 : vector<128x1xf32>
    %23 = arith.mulf %20, %20 : vector<128x1xf32>
    %24 = arith.subf %22, %23 : vector<128x1xf32>
    %25 = vector.broadcast %20 : vector<128x1xf32> to vector<128x64xf32>
    %26 = arith.subf %13, %25 : vector<128x64xf32>
    %cst_13 = arith.constant 9.99999974E-6 : f32
    %27 = vector.broadcast %cst_13 : f32 to vector<128x1xf32>
    %28 = arith.addf %24, %27 : vector<128x1xf32>
    %29 = math.rsqrt %28 : vector<128x1xf32>
    %30 = vector.broadcast %29 : vector<128x1xf32> to vector<128x64xf32>
    %31 = arith.mulf %26, %30 : vector<128x64xf32>
    %32 = vector.broadcast %2 : vector<1x64xf32> to vector<128x64xf32>
    %33 = arith.mulf %31, %32 : vector<128x64xf32>
    %34 = vector.broadcast %3 : vector<1x64xf32> to vector<128x64xf32>
    %35 = arith.addf %33, %34 : vector<128x64xf32>
    %cst_14 = arith.constant 0.000000e+00 : f32
    %36 = vector.broadcast %cst_14 : f32 to vector<128x64xf32>
    %37 = arith.maximumf %35, %36 : vector<128x64xf32>
    %cst_15 = arith.constant dense<0.000000e+00> : vector<1x128xf32>
    %38 = tpu.matmul %4, %37, %cst_15 {dimension_numbers = #tpu.dot_dimension_numbers<[1], [1], [0], [0], [0, 0, 1, 0], [], []>} : vector<1x64xf32>, vector<128x64xf32>, vector<1x128xf32> -> vector<1x128xf32>
    %c0_16 = arith.constant 0 : index
    %c0_17 = arith.constant 0 : index
    %39 = memref.load %arg5[%c0_16, %c0_17] : memref<1x1xf32, #tpu.memory_space<smem>>
    %40 = vector.broadcast %39 : f32 to vector<1x128xf32>
    %41 = arith.addf %38, %40 : vector<1x128xf32>
    %c0_18 = arith.constant 0 : index
    %c0_19 = arith.constant 0 : index
    %42 = vector.load %arg6[%c0_18, %c0_19] : memref<1x128xf32, #tpu.memory_space<vmem>>, vector<1x128xf32>
    tpu.vector_store %arg6[%c0_18, %c0_19], %41 {strides = array<i32>} : memref<1x128xf32, #tpu.memory_space<vmem>>, vector<1x128xf32>,
    return
  }
  func.func @transform_0(%arg0: i32) -> (i32, i32) {
    %c0_i32 = arith.constant 0 : i32
    %c0_i32_0 = arith.constant 0 : i32
    return %arg0, %c0_i32 : i32, i32
  }
  func.func @transform_1(%arg0: i32) -> (i32, i32) {
    %c0_i32 = arith.constant 0 : i32
    %c0_i32_0 = arith.constant 0 : i32
    return %arg0, %c0_i32 : i32, i32
  }
  func.func @transform_2(%arg0: i32) -> (i32, i32) {
    %c0_i32 = arith.constant 0 : i32
    %c0_i32_0 = arith.constant 0 : i32
    %c0_i32_1 = arith.constant 0 : i32
    return %c0_i32, %c0_i32_0 : i32, i32
  }
  func.func @transform_3(%arg0: i32) -> (i32, i32) {
    %c0_i32 = arith.constant 0 : i32
    %c0_i32_0 = arith.constant 0 : i32
    %c0_i32_1 = arith.constant 0 : i32
    return %c0_i32, %c0_i32_0 : i32, i32
  }
  func.func @transform_4(%arg0: i32) -> (i32, i32) {
    %c0_i32 = arith.constant 0 : i32
    %c0_i32_0 = arith.constant 0 : i32
    %c0_i32_1 = arith.constant 0 : i32
    return %c0_i32, %c0_i32_0 : i32, i32
  }
  func.func @transform_5(%arg0: i32) -> (i32, i32) {
    %c0_i32 = arith.constant 0 : i32
    %c0_i32_0 = arith.constant 0 : i32
    return %c0_i32, %arg0 : i32, i32
  }
}

</mosaic_0001>

<llo_original>
// kernel: literal_embeddings_clifford_forward.1
$region0: #{literal_embeddings_clifford_forward.1}
  #allocation0 [shape = 'u32[]', space=smem, size = 0x4, offset = 0x4, fixed_abs, tag = 'smem constant byte address 0x4 - core index']
  #allocation1 [shape = 'u32[144,128]{1,0:T(1,128)}', space=vmem, size = 0x12000, scoped, tag = 'internal scratch']
  #allocation2 [shape = 'f32[1,1]{1,0:T(1,128)S(6)}', space=smem, size = 0x200, scoped, tag = 'scoped memory for literal_embeddings_clifford_forward.1']
  %s0 = inlined_call_operand.vmem [shape: f32[128,32], index: 0, kind: input, shape index: {}]
  %s1 = inlined_call_operand.vmem [shape: f32[128,32], index: 1, kind: input, shape index: {}]
  %s2 = inlined_call_operand.vmem [shape: f32[64,64], index: 2, kind: input, shape index: {}]
  %s3 = inlined_call_operand.vmem [shape: f32[4,64], index: 3, kind: input, shape index: {}]
  %s4 = inlined_call_operand.<no memory space> [shape: f32[1,1], index: 4, kind: input, shape index: {}]
  %s5 = inlined_call_operand.vmem [shape: f32[1,128], index: 5, kind: output, shape index: {}]
  %s6 = sld [smem:[#allocation0]]
  $region30: #{literal_embeddings_clifford_forward.1} parent=0
    _
  %s8 = ssub.s32 1, %s6
  %s9 = scalar_select 0, %s8, %s6
  %10 = sst [smem:[#allocation2]] %s4
  // Predicated region
  $region2: #{literal_embeddings_clifford_forward.1} parent=0 // pred_check
    _
  $region3: #{literal_embeddings_clifford_forward.1} parent=0 // pred_check_branch
    %12 = sbr.rel (0) target = $region5
  $region4: #{literal_embeddings_clifford_forward.1} parent=0 // pred_region
    _
  $region5: #{literal_embeddings_clifford_forward.1} parent=0 // pred_fallthru
    _
  // Predicated region
  $region6: #{literal_embeddings_clifford_forward.1} parent=0 // pred_check
    _
  $region7: #{literal_embeddings_clifford_forward.1} parent=0 // pred_check_branch
    %14 = sbr.rel (0) target = $region9
  $region8: #{literal_embeddings_clifford_forward.1} parent=0 // pred_region
    _
  $region9: #{literal_embeddings_clifford_forward.1} parent=0 // pred_fallthru
    _
  // Predicated region
  $region10: #{literal_embeddings_clifford_forward.1} parent=0 // pred_check
    _
  $region11: #{literal_embeddings_clifford_forward.1} parent=0 // pred_check_branch
    %16 = sbr.rel (0) target = $region13
  $region12: #{literal_embeddings_clifford_forward.1} parent=0 // pred_region
    _
  $region13: #{literal_embeddings_clifford_forward.1} parent=0 // pred_fallthru
    _
  // Predicated region
  $region14: #{literal_embeddings_clifford_forward.1} parent=0 // pred_check
    _
  $region15: #{literal_embeddings_clifford_forward.1} parent=0 // pred_check_branch
    %18 = sbr.rel (0) target = $region17
  $region16: #{literal_embeddings_clifford_forward.1} parent=0 // pred_region
    _
  $region17: #{literal_embeddings_clifford_forward.1} parent=0 // pred_fallthru
    _
  // Predicated region
  $region18: #{literal_embeddings_clifford_forward.1} parent=0 // pred_check
    _
  $region19: #{literal_embeddings_clifford_forward.1} parent=0 // pred_check_branch
    %20 = sbr.rel (0) target = $region21
  $region20: #{literal_embeddings_clifford_forward.1} parent=0 // pred_region
    _
  $region21: #{literal_embeddings_clifford_forward.1} parent=0 // pred_fallthru
    _
  %v21 = vld [vmem:[%s3] sm:$0xf]
  %v22 = vld [vmem:[%s0] sm:$0xff]
  %v23 = vld [vmem:[%s0 + $0x8] sm:$0xff]
  %v24 = vld [vmem:[%s0 + $0x10] sm:$0xff]
  %v25 = vld [vmem:[%s0 + $0x18] sm:$0xff]
  %v26 = vld [vmem:[%s0 + $0x20] sm:$0xff]
  %v27 = vld [vmem:[%s0 + $0x28] sm:$0xff]
  %v28 = vld [vmem:[%s0 + $0x30] sm:$0xff]
  %v29 = vld [vmem:[%s0 + $0x38] sm:$0xff]
  %v30 = vld [vmem:[%s0 + $0x40] sm:$0xff]
  %v31 = vld [vmem:[%s0 + $0x48] sm:$0xff]
  %v32 = vld [vmem:[%s0 + $0x50] sm:$0xff]
  %v33 = vld [vmem:[%s0 + $0x58] sm:$0xff]
  %v34 = vld [vmem:[%s0 + $0x60] sm:$0xff]
  %v35 = vld [vmem:[%s0 + $0x68] sm:$0xff]
  %v36 = vld [vmem:[%s0 + $0x70] sm:$0xff]
  %v37 = vld [vmem:[%s0 + $0x78] sm:$0xff]
  %v38 = vld [vmem:[%s2] sm:$0xff]
  %v39 = vld [vmem:[%s2 + $0x8] sm:$0xff]
  %v40 = vld [vmem:[%s2 + $0x10] sm:$0xff]
  %v41 = vld [vmem:[%s2 + $0x18] sm:$0xff]
  %v42 = vld [vmem:[%s1] sm:$0xff]
  %v43 = vld [vmem:[%s1 + $0x8] sm:$0xff]
  %v44 = vld [vmem:[%s1 + $0x10] sm:$0xff]
  %v45 = vld [vmem:[%s1 + $0x18] sm:$0xff]
  %v46 = vld [vmem:[%s1 + $0x20] sm:$0xff]
  %v47 = vld [vmem:[%s1 + $0x28] sm:$0xff]
  %v48 = vld [vmem:[%s1 + $0x30] sm:$0xff]
  %v49 = vld [vmem:[%s1 + $0x38] sm:$0xff]
  %v50 = vld [vmem:[%s1 + $0x40] sm:$0xff]
  %v51 = vld [vmem:[%s1 + $0x48] sm:$0xff]
  %v52 = vld [vmem:[%s1 + $0x50] sm:$0xff]
  %v53 = vld [vmem:[%s1 + $0x58] sm:$0xff]
  %v54 = vld [vmem:[%s1 + $0x60] sm:$0xff]
  %v55 = vld [vmem:[%s1 + $0x68] sm:$0xff]
  %v56 = vld [vmem:[%s1 + $0x70] sm:$0xff]
  %v57 = vld [vmem:[%s1 + $0x78] sm:$0xff]
  %v58 = vld [vmem:[%s2 + $0x20] sm:$0xff]
  %v59 = vld [vmem:[%s2 + $0x28] sm:$0xff]
  %v60 = vld [vmem:[%s2 + $0x30] sm:$0xff]
  %v61 = vld [vmem:[%s2 + $0x38] sm:$0xff]
  %vm62 = vcmask 261120
  %v64 = vsel %vm62, %v42, 0
  %v67 = vsel %vm62, %v43, 0
  %v70 = vsel %vm62, %v44, 0
  %v73 = vsel %vm62, %v45, 0
  %v76 = vsel %vm62, %v46, 0
  %v79 = vsel %vm62, %v47, 0
  %v82 = vsel %vm62, %v48, 0
  %v85 = vsel %vm62, %v49, 0
  %v88 = vsel %vm62, %v50, 0
  %v91 = vsel %vm62, %v51, 0
  %v94 = vsel %vm62, %v52, 0
  %v97 = vsel %vm62, %v53, 0
  %v100 = vsel %vm62, %v54, 0
  %v103 = vsel %vm62, %v55, 0
  %v106 = vsel %vm62, %v56, 0
  %v109 = vsel %vm62, %v57, 0
  %111 = vmatprep.subr.mxu0 0.0
  %112 = vmatpush1.msra.mxu0 %v58
  %113 = vmatprep.subr.mxu0 0.0
  %114 = vmatpush1.msra.mxu0 %v59
  %115 = vmatprep.subr.mxu0 0.0
  %116 = vmatpush1.msra.mxu0 %v60
  %117 = vmatprep.subr.mxu0 0.0
  %118 = vmatpush1.msra.mxu0 %v61
  %119 = vmatprep.subr.mxu0 0.0
  %120 = vmatpush1.msra.mxu0 0.0
  %121 = vmatprep.subr.mxu0 0.0
  %122 = vmatpush1.msra.mxu0 0.0
  %123 = vmatprep.subr.mxu0 0.0
  %124 = vmatpush1.msra.mxu0 0.0
  %125 = vmatprep.subr.mxu0 0.0
  %126 = vmatpush1.msra.mxu0 0.0
  %127 = vmatprep.subr.mxu0 0.0
  %128 = vmatpush1.msra.mxu0 0.0
  %129 = vmatprep.subr.mxu0 0.0
  %130 = vmatpush1.msra.mxu0 0.0
  %131 = vmatprep.subr.mxu0 0.0
  %132 = vmatpush1.msra.mxu0 0.0
  %133 = vmatprep.subr.mxu0 0.0
  %134 = vmatpush1.msra.mxu0 0.0
  %135 = vmatprep.subr.mxu0 0.0
  %136 = vmatpush1.msra.mxu0 0.0
  %137 = vmatprep.subr.mxu0 0.0
  %138 = vmatpush1.msra.mxu0 0.0
  %139 = vmatprep.subr.mxu0 0.0
  %140 = vmatpush1.msra.mxu0 0.0
  %141 = vmatprep.subr.mxu0 0.0
  %142 = vmatpush1.msra.mxu0 0.0
  %143 = vmatprep.subr.mxu0 0.0
  %144 = vmatpush1.msra.mxu0 0.0
  %145 = vmatprep.subr.mxu0 0.0
  %146 = vmatpush1.msra.mxu0 0.0
  %147 = vmatprep.subr.mxu0 0.0
  %148 = vmatpush1.msra.mxu0 0.0
  %149 = vmatprep.subr.mxu0 0.0
  %150 = vmatpush1.msra.mxu0 0.0
  %151 = vmatprep.subr.mxu0 0.0
  %152 = vmatpush1.msra.mxu0 0.0
  %153 = vmatprep.subr.mxu0 0.0
  %154 = vmatpush1.msra.mxu0 0.0
  %155 = vmatprep.subr.mxu0 0.0
  %156 = vmatpush1.msra.mxu0 0.0
  %157 = vmatprep.subr.mxu0 0.0
  %158 = vmatpush1.msra.mxu0 0.0
  %159 = vmatprep.subr.mxu0 0.0
  %160 = vmatpush1.msra.mxu0 0.0
  %161 = vmatprep.subr.mxu0 0.0
  %162 = vmatpush1.msra.mxu0 0.0
  %163 = vmatprep.subr.mxu0 0.0
  %164 = vmatpush1.msra.mxu0 0.0
  %165 = vmatprep.subr.mxu0 0.0
  %166 = vmatpush1.msra.mxu0 0.0
  %167 = vmatprep.subr.mxu0 0.0
  %168 = vmatpush1.msra.mxu0 0.0
  %169 = vmatprep.subr.mxu0 0.0
  %170 = vmatpush1.msra.mxu0 0.0
  %171 = vmatprep.subr.mxu0 0.0
  %172 = vmatpush1.msra.mxu0 0.0
  %173 = vmatprep.subr.mxu0 0.0
  %174 = vmatpush1.msra.mxu0 0.0
  %175 = vmatprep.mubr.f32.mxu0 0.0
  %176 = vmatmul.mubr.f32.gmra.mrb[0].mxu0 %v64
  %v177 = vpop.f32.mrb[0].mxu0
  %v178 = vadd.f32 0.0, %v177
  %v179 = vpop.f32.mrb[0].mxu0
  %180 = vmatprep.mubr.f32.mxu0 0.0
  %181 = vmatmul.mubr.f32.gmra.mrb[0].mxu0 %v67
  %v182 = vpop.f32.mrb[0].mxu0
  %v183 = vadd.f32 0.0, %v182
  %v184 = vpop.f32.mrb[0].mxu0
  %185 = vmatprep.mubr.f32.mxu0 0.0
  %186 = vmatmul.mubr.f32.gmra.mrb[0].mxu0 %v70
  %v187 = vpop.f32.mrb[0].mxu0
  %v188 = vadd.f32 0.0, %v187
  %v189 = vpop.f32.mrb[0].mxu0
  %190 = vmatprep.mubr.f32.mxu0 0.0
  %191 = vmatmul.mubr.f32.gmra.mrb[0].mxu0 %v73
  %v192 = vpop.f32.mrb[0].mxu0
  %v193 = vadd.f32 0.0, %v192
  %v194 = vpop.f32.mrb[0].mxu0
  %195 = vmatprep.mubr.f32.mxu0 0.0
  %196 = vmatmul.mubr.f32.gmra.mrb[0].mxu0 %v76
  %v197 = vpop.f32.mrb[0].mxu0
  %v198 = vadd.f32 0.0, %v197
  %v199 = vpop.f32.mrb[0].mxu0
  %200 = vmatprep.mubr.f32.mxu0 0.0
  %201 = vmatmul.mubr.f32.gmra.mrb[0].mxu0 %v79
  %v202 = vpop.f32.mrb[0].mxu0
  %v203 = vadd.f32 0.0, %v202
  %v204 = vpop.f32.mrb[0].mxu0
  %205 = vmatprep.mubr.f32.mxu0 0.0
  %206 = vmatmul.mubr.f32.gmra.mrb[0].mxu0 %v82
  %v207 = vpop.f32.mrb[0].mxu0
  %v208 = vadd.f32 0.0, %v207
  %v209 = vpop.f32.mrb[0].mxu0
  %210 = vmatprep.mubr.f32.mxu0 0.0
  %211 = vmatmul.mubr.f32.gmra.mrb[0].mxu0 %v85
  %v212 = vpop.f32.mrb[0].mxu0
  %v213 = vadd.f32 0.0, %v212
  %v214 = vpop.f32.mrb[0].mxu0
  %215 = vmatprep.mubr.f32.mxu0 0.0
  %216 = vmatmul.mubr.f32.gmra.mrb[0].mxu0 %v88
  %v217 = vpop.f32.mrb[0].mxu0
  %v218 = vadd.f32 0.0, %v217
  %v219 = vpop.f32.mrb[0].mxu0
  %220 = vmatprep.mubr.f32.mxu0 0.0
  %221 = vmatmul.mubr.f32.gmra.mrb[0].mxu0 %v91
  %v222 = vpop.f32.mrb[0].mxu0
  %v223 = vadd.f32 0.0, %v222
  %v224 = vpop.f32.mrb[0].mxu0
  %225 = vmatprep.mubr.f32.mxu0 0.0
  %226 = vmatmul.mubr.f32.gmra.mrb[0].mxu0 %v94
  %v227 = vpop.f32.mrb[0].mxu0
  %v228 = vadd.f32 0.0, %v227
  %v229 = vpop.f32.mrb[0].mxu0
  %230 = vmatprep.mubr.f32.mxu0 0.0
  %231 = vmatmul.mubr.f32.gmra.mrb[0].mxu0 %v97
  %v232 = vpop.f32.mrb[0].mxu0
  %v233 = vadd.f32 0.0, %v232
  %v234 = vpop.f32.mrb[0].mxu0
  %235 = vmatprep.mubr.f32.mxu0 0.0
  %236 = vmatmul.mubr.f32.gmra.mrb[0].mxu0 %v100
  %v237 = vpop.f32.mrb[0].mxu0
  %v238 = vadd.f32 0.0, %v237
  %v239 = vpop.f32.mrb[0].mxu0
  %240 = vmatprep.mubr.f32.mxu0 0.0
  %241 = vmatmul.mubr.f32.gmra.mrb[0].mxu0 %v103
  %v242 = vpop.f32.mrb[0].mxu0
  %v243 = vadd.f32 0.0, %v242
  %v244 = vpop.f32.mrb[0].mxu0
  %245 = vmatprep.mubr.f32.mxu0 0.0
  %246 = vmatmul.mubr.f32.gmra.mrb[0].mxu0 %v106
  %v247 = vpop.f32.mrb[0].mxu0
  %v248 = vadd.f32 0.0, %v247
  %v249 = vpop.f32.mrb[0].mxu0
  %250 = vmatprep.mubr.f32.mxu0 0.0
  %251 = vmatmul.mubr.f32.gmra.mrb[0].mxu0 %v109
  %v252 = vpop.f32.mrb[0].mxu0
  %v253 = vadd.f32 0.0, %v252
  %v254 = vpop.f32.mrb[0].mxu0
  %255 = vdwg.mxu0
  %v257 = vsel %vm62, %v22, 0
  %v260 = vsel %vm62, %v23, 0
  %v263 = vsel %vm62, %v24, 0
  %v266 = vsel %vm62, %v25, 0
  %v269 = vsel %vm62, %v26, 0
  %v272 = vsel %vm62, %v27, 0
  %v275 = vsel %vm62, %v28, 0
  %v278 = vsel %vm62, %v29, 0
  %v281 = vsel %vm62, %v30, 0
  %v284 = vsel %vm62, %v31, 0
  %v287 = vsel %vm62, %v32, 0
  %v290 = vsel %vm62, %v33, 0
  %v293 = vsel %vm62, %v34, 0
  %v296 = vsel %vm62, %v35, 0
  %v299 = vsel %vm62, %v36, 0
  %v302 = vsel %vm62, %v37, 0
  %304 = vmatprep.subr.mxu0 0.0
  %305 = vmatpush1.msra.mxu0 %v38
  %306 = vmatprep.subr.mxu0 0.0
  %307 = vmatpush1.msra.mxu0 %v39
  %308 = vmatprep.subr.mxu0 0.0
  %309 = vmatpush1.msra.mxu0 %v40
  %310 = vmatprep.subr.mxu0 0.0
  %311 = vmatpush1.msra.mxu0 %v41
  %312 = vmatprep.subr.mxu0 0.0
  %313 = vmatpush1.msra.mxu0 0.0
  %314 = vmatprep.subr.mxu0 0.0
  %315 = vmatpush1.msra.mxu0 0.0
  %316 = vmatprep.subr.mxu0 0.0
  %317 = vmatpush1.msra.mxu0 0.0
  %318 = vmatprep.subr.mxu0 0.0
  %319 = vmatpush1.msra.mxu0 0.0
  %320 = vmatprep.subr.mxu0 0.0
  %321 = vmatpush1.msra.mxu0 0.0
  %322 = vmatprep.subr.mxu0 0.0
  %323 = vmatpush1.msra.mxu0 0.0
  %324 = vmatprep.subr.mxu0 0.0
  %325 = vmatpush1.msra.mxu0 0.0
  %326 = vmatprep.subr.mxu0 0.0
  %327 = vmatpush1.msra.mxu0 0.0
  %328 = vmatprep.subr.mxu0 0.0
  %329 = vmatpush1.msra.mxu0 0.0
  %330 = vmatprep.subr.mxu0 0.0
  %331 = vmatpush1.msra.mxu0 0.0
  %332 = vmatprep.subr.mxu0 0.0
  %333 = vmatpush1.msra.mxu0 0.0
  %334 = vmatprep.subr.mxu0 0.0
  %335 = vmatpush1.msra.mxu0 0.0
  %336 = vmatprep.subr.mxu0 0.0
  %337 = vmatpush1.msra.mxu0 0.0
  %338 = vmatprep.subr.mxu0 0.0
  %339 = vmatpush1.msra.mxu0 0.0
  %340 = vmatprep.subr.mxu0 0.0
  %341 = vmatpush1.msra.mxu0 0.0
  %342 = vmatprep.subr.mxu0 0.0
  %343 = vmatpush1.msra.mxu0 0.0
  %344 = vmatprep.subr.mxu0 0.0
  %345 = vmatpush1.msra.mxu0 0.0
  %346 = vmatprep.subr.mxu0 0.0
  %347 = vmatpush1.msra.mxu0 0.0
  %348 = vmatprep.subr.mxu0 0.0
  %349 = vmatpush1.msra.mxu0 0.0
  %350 = vmatprep.subr.mxu0 0.0
  %351 = vmatpush1.msra.mxu0 0.0
  %352 = vmatprep.subr.mxu0 0.0
  %353 = vmatpush1.msra.mxu0 0.0
  %354 = vmatprep.subr.mxu0 0.0
  %355 = vmatpush1.msra.mxu0 0.0
  %356 = vmatprep.subr.mxu0 0.0
  %357 = vmatpush1.msra.mxu0 0.0
  %358 = vmatprep.subr.mxu0 0.0
  %359 = vmatpush1.msra.mxu0 0.0
  %360 = vmatprep.subr.mxu0 0.0
  %361 = vmatpush1.msra.mxu0 0.0
  %362 = vmatprep.subr.mxu0 0.0
  %363 = vmatpush1.msra.mxu0 0.0
  %364 = vmatprep.subr.mxu0 0.0
  %365 = vmatpush1.msra.mxu0 0.0
  %366 = vmatprep.subr.mxu0 0.0
  %367 = vmatpush1.msra.mxu0 0.0
  %368 = vmatprep.mubr.f32.mxu0 0.0
  %369 = vmatmul.mubr.f32.gmra.mrb[0].mxu0 %v257
  %v370 = vpop.f32.mrb[0].mxu0
  %v371 = vadd.f32 %v178, %v370
  %v372 = vpop.f32.mrb[0].mxu0
  %373 = vmatprep.mubr.f32.mxu0 0.0
  %374 = vmatmul.mubr.f32.gmra.mrb[0].mxu0 %v260
  %v375 = vpop.f32.mrb[0].mxu0
  %v376 = vadd.f32 %v183, %v375
  %v377 = vpop.f32.mrb[0].mxu0
  %378 = vmatprep.mubr.f32.mxu0 0.0
  %379 = vmatmul.mubr.f32.gmra.mrb[0].mxu0 %v263
  %v380 = vpop.f32.mrb[0].mxu0
  %v381 = vadd.f32 %v188, %v380
  %v382 = vpop.f32.mrb[0].mxu0
  %383 = vmatprep.mubr.f32.mxu0 0.0
  %384 = vmatmul.mubr.f32.gmra.mrb[0].mxu0 %v266
  %v385 = vpop.f32.mrb[0].mxu0
  %v386 = vadd.f32 %v193, %v385
  %v387 = vpop.f32.mrb[0].mxu0
  %388 = vmatprep.mubr.f32.mxu0 0.0
  %389 = vmatmul.mubr.f32.gmra.mrb[0].mxu0 %v269
  %v390 = vpop.f32.mrb[0].mxu0
  %v391 = vadd.f32 %v198, %v390
  %v392 = vpop.f32.mrb[0].mxu0
  %393 = vmatprep.mubr.f32.mxu0 0.0
  %394 = vmatmul.mubr.f32.gmra.mrb[0].mxu0 %v272
  %v395 = vpop.f32.mrb[0].mxu0
  %v396 = vadd.f32 %v203, %v395
  %v397 = vpop.f32.mrb[0].mxu0
  %398 = vmatprep.mubr.f32.mxu0 0.0
  %399 = vmatmul.mubr.f32.gmra.mrb[0].mxu0 %v275
  %v400 = vpop.f32.mrb[0].mxu0
  %v401 = vadd.f32 %v208, %v400
  %v402 = vpop.f32.mrb[0].mxu0
  %403 = vmatprep.mubr.f32.mxu0 0.0
  %404 = vmatmul.mubr.f32.gmra.mrb[0].mxu0 %v278
  %v405 = vpop.f32.mrb[0].mxu0
  %v406 = vadd.f32 %v213, %v405
  %v407 = vpop.f32.mrb[0].mxu0
  %408 = vmatprep.mubr.f32.mxu0 0.0
  %409 = vmatmul.mubr.f32.gmra.mrb[0].mxu0 %v281
  %v410 = vpop.f32.mrb[0].mxu0
  %v411 = vadd.f32 %v218, %v410
  %v412 = vpop.f32.mrb[0].mxu0
  %413 = vmatprep.mubr.f32.mxu0 0.0
  %414 = vmatmul.mubr.f32.gmra.mrb[0].mxu0 %v284
  %v415 = vpop.f32.mrb[0].mxu0
  %v416 = vadd.f32 %v223, %v415
  %v417 = vpop.f32.mrb[0].mxu0
  %418 = vmatprep.mubr.f32.mxu0 0.0
  %419 = vmatmul.mubr.f32.gmra.mrb[0].mxu0 %v287
  %v420 = vpop.f32.mrb[0].mxu0
  %v421 = vadd.f32 %v228, %v420
  %v422 = vpop.f32.mrb[0].mxu0
  %423 = vmatprep.mubr.f32.mxu0 0.0
  %424 = vmatmul.mubr.f32.gmra.mrb[0].mxu0 %v290
  %v425 = vpop.f32.mrb[0].mxu0
  %v426 = vadd.f32 %v233, %v425
  %v427 = vpop.f32.mrb[0].mxu0
  %428 = vmatprep.mubr.f32.mxu0 0.0
  %429 = vmatmul.mubr.f32.gmra.mrb[0].mxu0 %v293
  %v430 = vpop.f32.mrb[0].mxu0
  %v431 = vadd.f32 %v238, %v430
  %v432 = vpop.f32.mrb[0].mxu0
  %433 = vmatprep.mubr.f32.mxu0 0.0
  %434 = vmatmul.mubr.f32.gmra.mrb[0].mxu0 %v296
  %v435 = vpop.f32.mrb[0].mxu0
  %v436 = vadd.f32 %v243, %v435
  %v437 = vpop.f32.mrb[0].mxu0
  %438 = vmatprep.mubr.f32.mxu0 0.0
  %439 = vmatmul.mubr.f32.gmra.mrb[0].mxu0 %v299
  %v440 = vpop.f32.mrb[0].mxu0
  %v441 = vadd.f32 %v248, %v440
  %v442 = vpop.f32.mrb[0].mxu0
  %443 = vmatprep.mubr.f32.mxu0 0.0
  %444 = vmatmul.mubr.f32.gmra.mrb[0].mxu0 %v302
  %v445 = vpop.f32.mrb[0].mxu0
  %v446 = vadd.f32 %v253, %v445
  %v447 = vpop.f32.mrb[0].mxu0
  %448 = vdwg.mxu0
  %v449 = vlaneseq
  %v450 = vshrl.u32 %v449, 7
  %v451 = vsub.s32 0, %v450
  %v452 = vrot.slane %v21, %v451
  %v453 = vadd.f32 %v371, %v452
  %v454 = vadd.f32 %v376, %v452
  %v455 = vadd.f32 %v381, %v452
  %v456 = vadd.f32 %v386, %v452
  %v457 = vadd.f32 %v391, %v452
  %v458 = vadd.f32 %v396, %v452
  %v459 = vadd.f32 %v401, %v452
  %v460 = vadd.f32 %v406, %v452
  %v461 = vadd.f32 %v411, %v452
  %v462 = vadd.f32 %v416, %v452
  %v463 = vadd.f32 %v421, %v452
  %v464 = vadd.f32 %v426, %v452
  %v465 = vadd.f32 %v431, %v452
  %v466 = vadd.f32 %v436, %v452
  %v467 = vadd.f32 %v441, %v452
  %v468 = vadd.f32 %v446, %v452
  %vm469 = vcmask 523264
  %v470 = vsel %vm469, %v453, 0.0
  %471 = vadd.xlane.f32.xlu0 %v470
  %v472 = vpop.xlane.xlu0 %471
  %v473 = vsel %vm469, %v454, 0.0
  %474 = vadd.xlane.f32.xlu0 %v473
  %v475 = vpop.xlane.xlu0 %474
  %v476 = vsel %vm469, %v455, 0.0
  %477 = vadd.xlane.f32.xlu0 %v476
  %v478 = vpop.xlane.xlu0 %477
  %v479 = vsel %vm469, %v456, 0.0
  %480 = vadd.xlane.f32.xlu0 %v479
  %v481 = vpop.xlane.xlu0 %480
  %v482 = vsel %vm469, %v457, 0.0
  %483 = vadd.xlane.f32.xlu0 %v482
  %v484 = vpop.xlane.xlu0 %483
  %v485 = vsel %vm469, %v458, 0.0
  %486 = vadd.xlane.f32.xlu0 %v485
  %v487 = vpop.xlane.xlu0 %486
  %v488 = vsel %vm469, %v459, 0.0
  %489 = vadd.xlane.f32.xlu0 %v488
  %v490 = vpop.xlane.xlu0 %489
  %v491 = vsel %vm469, %v460, 0.0
  %492 = vadd.xlane.f32.xlu0 %v491
  %v493 = vpop.xlane.xlu0 %492
  %v494 = vsel %vm469, %v461, 0.0
  %495 = vadd.xlane.f32.xlu0 %v494
  %v496 = vpop.xlane.xlu0 %495
  %v497 = vsel %vm469, %v462, 0.0
  %498 = vadd.xlane.f32.xlu0 %v497
  %v499 = vpop.xlane.xlu0 %498
  %v500 = vsel %vm469, %v463, 0.0
  %501 = vadd.xlane.f32.xlu0 %v500
  %v502 = vpop.xlane.xlu0 %501
  %v503 = vsel %vm469, %v464, 0.0
  %504 = vadd.xlane.f32.xlu0 %v503
  %v505 = vpop.xlane.xlu0 %504
  %v506 = vsel %vm469, %v465, 0.0
  %507 = vadd.xlane.f32.xlu0 %v506
  %v508 = vpop.xlane.xlu0 %507
  %v509 = vsel %vm469, %v466, 0.0
  %510 = vadd.xlane.f32.xlu0 %v509
  %v511 = vpop.xlane.xlu0 %510
  %v512 = vsel %vm469, %v467, 0.0
  %513 = vadd.xlane.f32.xlu0 %v512
  %v514 = vpop.xlane.xlu0 %513
  %v515 = vsel %vm469, %v468, 0.0
  %516 = vadd.xlane.f32.xlu0 %v515
  %v517 = vpop.xlane.xlu0 %516
  %v518 = vmul.f32 %v453, %v453
  %v519 = vmul.f32 %v454, %v454
  %v520 = vmul.f32 %v455, %v455
  %v521 = vmul.f32 %v456, %v456
  %v522 = vmul.f32 %v457, %v457
  %v523 = vmul.f32 %v458, %v458
  %v524 = vmul.f32 %v459, %v459
  %v525 = vmul.f32 %v460, %v460
  %v526 = vmul.f32 %v461, %v461
  %v527 = vmul.f32 %v462, %v462
  %v528 = vmul.f32 %v463, %v463
  %v529 = vmul.f32 %v464, %v464
  %v530 = vmul.f32 %v465, %v465
  %v531 = vmul.f32 %v466, %v466
  %v532 = vmul.f32 %v467, %v467
  %v533 = vmul.f32 %v468, %v468
  %v534 = vsel %vm469, %v518, 0.0
  %535 = vadd.xlane.f32.xlu0 %v534
  %v536 = vpop.xlane.xlu0 %535
  %v537 = vsel %vm469, %v519, 0.0
  %538 = vadd.xlane.f32.xlu0 %v537
  %v539 = vpop.xlane.xlu0 %538
  %v540 = vsel %vm469, %v520, 0.0
  %541 = vadd.xlane.f32.xlu0 %v540
  %v542 = vpop.xlane.xlu0 %541
  %v543 = vsel %vm469, %v521, 0.0
  %544 = vadd.xlane.f32.xlu0 %v543
  %v545 = vpop.xlane.xlu0 %544
  %v546 = vsel %vm469, %v522, 0.0
  %547 = vadd.xlane.f32.xlu0 %v546
  %v548 = vpop.xlane.xlu0 %547
  %v549 = vsel %vm469, %v523, 0.0
  %550 = vadd.xlane.f32.xlu0 %v549
  %v551 = vpop.xlane.xlu0 %550
  %v552 = vsel %vm469, %v524, 0.0
  %553 = vadd.xlane.f32.xlu0 %v552
  %v554 = vpop.xlane.xlu0 %553
  %v555 = vsel %vm469, %v525, 0.0
  %556 = vadd.xlane.f32.xlu0 %v555
  %v557 = vpop.xlane.xlu0 %556
  %v558 = vsel %vm469, %v526, 0.0
  %559 = vadd.xlane.f32.xlu0 %v558
  %v560 = vpop.xlane.xlu0 %559
  %v561 = vsel %vm469, %v527, 0.0
  %562 = vadd.xlane.f32.xlu0 %v561
  %v563 = vpop.xlane.xlu0 %562
  %v564 = vsel %vm469, %v528, 0.0
  %565 = vadd.xlane.f32.xlu0 %v564
  %v566 = vpop.xlane.xlu0 %565
  %v567 = vsel %vm469, %v529, 0.0
  %568 = vadd.xlane.f32.xlu0 %v567
  %v569 = vpop.xlane.xlu0 %568
  %v570 = vsel %vm469, %v530, 0.0
  %571 = vadd.xlane.f32.xlu0 %v570
  %v572 = vpop.xlane.xlu0 %571
  %v573 = vsel %vm469, %v531, 0.0
  %574 = vadd.xlane.f32.xlu0 %v573
  %v575 = vpop.xlane.xlu0 %574
  %v576 = vsel %vm469, %v532, 0.0
  %577 = vadd.xlane.f32.xlu0 %v576
  %v578 = vpop.xlane.xlu0 %577
  %v579 = vsel %vm469, %v533, 0.0
  %580 = vadd.xlane.f32.xlu0 %v579
  %v581 = vpop.xlane.xlu0 %580
  %v582 = vmul.f32 %v472, 0.015625
  %v583 = vmul.f32 %v475, 0.015625
  %v584 = vmul.f32 %v478, 0.015625
  %v585 = vmul.f32 %v481, 0.015625
  %v586 = vmul.f32 %v484, 0.015625
  %v587 = vmul.f32 %v487, 0.015625
  %v588 = vmul.f32 %v490, 0.015625
  %v589 = vmul.f32 %v493, 0.015625
  %v590 = vmul.f32 %v496, 0.015625
  %v591 = vmul.f32 %v499, 0.015625
  %v592 = vmul.f32 %v502, 0.015625
  %v593 = vmul.f32 %v505, 0.015625
  %v594 = vmul.f32 %v508, 0.015625
  %v595 = vmul.f32 %v511, 0.015625
  %v596 = vmul.f32 %v514, 0.015625
  %v597 = vmul.f32 %v517, 0.015625
  %v598 = vmul.f32 %v536, 0.015625
  %v599 = vmul.f32 %v539, 0.015625
  %v600 = vmul.f32 %v542, 0.015625
  %v601 = vmul.f32 %v545, 0.015625
  %v602 = vmul.f32 %v548, 0.015625
  %v603 = vmul.f32 %v551, 0.015625
  %v604 = vmul.f32 %v554, 0.015625
  %v605 = vmul.f32 %v557, 0.015625
  %v606 = vmul.f32 %v560, 0.015625
  %v607 = vmul.f32 %v563, 0.015625
  %v608 = vmul.f32 %v566, 0.015625
  %v609 = vmul.f32 %v569, 0.015625
  %v610 = vmul.f32 %v572, 0.015625
  %v611 = vmul.f32 %v575, 0.015625
  %v612 = vmul.f32 %v578, 0.015625
  %v613 = vmul.f32 %v581, 0.015625
  %v614 = vmul.f32 %v582, %v582
  %v615 = vmul.f32 %v583, %v583
  %v616 = vmul.f32 %v584, %v584
  %v617 = vmul.f32 %v585, %v585
  %v618 = vmul.f32 %v586, %v586
  %v619 = vmul.f32 %v587, %v587
  %v620 = vmul.f32 %v588, %v588
  %v621 = vmul.f32 %v589, %v589
  %v622 = vmul.f32 %v590, %v590
  %v623 = vmul.f32 %v591, %v591
  %v624 = vmul.f32 %v592, %v592
  %v625 = vmul.f32 %v593, %v593
  %v626 = vmul.f32 %v594, %v594
  %v627 = vmul.f32 %v595, %v595
  %v628 = vmul.f32 %v596, %v596
  %v629 = vmul.f32 %v597, %v597
  %v630 = vsub.f32 %v598, %v614
  %v631 = vsub.f32 %v599, %v615
  %v632 = vsub.f32 %v600, %v616
  %v633 = vsub.f32 %v601, %v617
  %v634 = vsub.f32 %v602, %v618
  %v635 = vsub.f32 %v603, %v619
  %v636 = vsub.f32 %v604, %v620
  %v637 = vsub.f32 %v605, %v621
  %v638 = vsub.f32 %v606, %v622
  %v639 = vsub.f32 %v607, %v623
  %v640 = vsub.f32 %v608, %v624
  %v641 = vsub.f32 %v609, %v625
  %v642 = vsub.f32 %v610, %v626
  %v643 = vsub.f32 %v611, %v627
  %v644 = vsub.f32 %v612, %v628
  %v645 = vsub.f32 %v613, %v629
  %v646 = vsub.f32 %v453, %v582
  %v647 = vsub.f32 %v454, %v583
  %v648 = vsub.f32 %v455, %v584
  %v649 = vsub.f32 %v456, %v585
  %v650 = vsub.f32 %v457, %v586
  %v651 = vsub.f32 %v458, %v587
  %v652 = vsub.f32 %v459, %v588
  %v653 = vsub.f32 %v460, %v589
  %v654 = vsub.f32 %v461, %v590
  %v655 = vsub.f32 %v462, %v591
  %v656 = vsub.f32 %v463, %v592
  %v657 = vsub.f32 %v464, %v593
  %v658 = vsub.f32 %v465, %v594
  %v659 = vsub.f32 %v466, %v595
  %v660 = vsub.f32 %v467, %v596
  %v661 = vsub.f32 %v468, %v597
  %v662 = vadd.f32 %v630, 1e-05
  %v663 = vadd.f32 %v631, 1e-05
  %v664 = vadd.f32 %v632, 1e-05
  %v665 = vadd.f32 %v633, 1e-05
  %v666 = vadd.f32 %v634, 1e-05
  %v667 = vadd.f32 %v635, 1e-05
  %v668 = vadd.f32 %v636, 1e-05
  %v669 = vadd.f32 %v637, 1e-05
  %v670 = vadd.f32 %v638, 1e-05
  %v671 = vadd.f32 %v639, 1e-05
  %v672 = vadd.f32 %v640, 1e-05
  %v673 = vadd.f32 %v641, 1e-05
  %v674 = vadd.f32 %v642, 1e-05
  %v675 = vadd.f32 %v643, 1e-05
  %v676 = vadd.f32 %v644, 1e-05
  %v677 = vadd.f32 %v645, 1e-05
  %v678 = vrsqrt.pop %v662
  %v679 = vrsqrt.pop %v663
  %v680 = vrsqrt.pop %v664
  %v681 = vrsqrt.pop %v665
  %v682 = vrsqrt.pop %v666
  %v683 = vrsqrt.pop %v667
  %v684 = vrsqrt.pop %v668
  %v685 = vrsqrt.pop %v669
  %v686 = vrsqrt.pop %v670
  %v687 = vrsqrt.pop %v671
  %v688 = vrsqrt.pop %v672
  %v689 = vrsqrt.pop %v673
  %v690 = vrsqrt.pop %v674
  %v691 = vrsqrt.pop %v675
  %v692 = vrsqrt.pop %v676
  %v693 = vrsqrt.pop %v677
  %v694 = vmul.f32 %v646, %v678
  %v695 = vmul.f32 %v647, %v679
  %v696 = vmul.f32 %v648, %v680
  %v697 = vmul.f32 %v649, %v681
  %v698 = vmul.f32 %v650, %v682
  %v699 = vmul.f32 %v651, %v683
  %v700 = vmul.f32 %v652, %v684
  %v701 = vmul.f32 %v653, %v685
  %v702 = vmul.f32 %v654, %v686
  %v703 = vmul.f32 %v655, %v687
  %v704 = vmul.f32 %v656, %v688
  %v705 = vmul.f32 %v657, %v689
  %v706 = vmul.f32 %v658, %v690
  %v707 = vmul.f32 %v659, %v691
  %v708 = vmul.f32 %v660, %v692
  %v709 = vmul.f32 %v661, %v693
  %v710 = vlaneseq
  %v711 = vshrl.u32 %v710, 7
  %v712 = vsub.s32 1, %v711
  %v713 = vrot.slane %v21, %v712
  %v714 = vmul.f32 %v694, %v713
  %v715 = vmul.f32 %v695, %v713
  %v716 = vmul.f32 %v696, %v713
  %v717 = vmul.f32 %v697, %v713
  %v718 = vmul.f32 %v698, %v713
  %v719 = vmul.f32 %v699, %v713
  %v720 = vmul.f32 %v700, %v713
  %v721 = vmul.f32 %v701, %v713
  %v722 = vmul.f32 %v702, %v713
  %v723 = vmul.f32 %v703, %v713
  %v724 = vmul.f32 %v704, %v713
  %v725 = vmul.f32 %v705, %v713
  %v726 = vmul.f32 %v706, %v713
  %v727 = vmul.f32 %v707, %v713
  %v728 = vmul.f32 %v708, %v713
  %v729 = vmul.f32 %v709, %v713
  %v730 = vlaneseq
  %v731 = vshrl.u32 %v730, 7
  %v732 = vsub.s32 2, %v731
  %v733 = vrot.slane %v21, %v732
  %v734 = vadd.f32 %v714, %v733
  %v735 = vadd.f32 %v715, %v733
  %v736 = vadd.f32 %v716, %v733
  %v737 = vadd.f32 %v717, %v733
  %v738 = vadd.f32 %v718, %v733
  %v739 = vadd.f32 %v719, %v733
  %v740 = vadd.f32 %v720, %v733
  %v741 = vadd.f32 %v721, %v733
  %v742 = vadd.f32 %v722, %v733
  %v743 = vadd.f32 %v723, %v733
  %v744 = vadd.f32 %v724, %v733
  %v745 = vadd.f32 %v725, %v733
  %v746 = vadd.f32 %v726, %v733
  %v747 = vadd.f32 %v727, %v733
  %v748 = vadd.f32 %v728, %v733
  %v749 = vadd.f32 %v729, %v733
  %v750 = vmax.f32 %v734, 0.0
  %v751 = vmax.f32 %v735, 0.0
  %v752 = vmax.f32 %v736, 0.0
  %v753 = vmax.f32 %v737, 0.0
  %v754 = vmax.f32 %v738, 0.0
  %v755 = vmax.f32 %v739, 0.0
  %v756 = vmax.f32 %v740, 0.0
  %v757 = vmax.f32 %v741, 0.0
  %v758 = vmax.f32 %v742, 0.0
  %v759 = vmax.f32 %v743, 0.0
  %v760 = vmax.f32 %v744, 0.0
  %v761 = vmax.f32 %v745, 0.0
  %v762 = vmax.f32 %v746, 0.0
  %v763 = vmax.f32 %v747, 0.0
  %v764 = vmax.f32 %v748, 0.0
  %v765 = vmax.f32 %v749, 0.0
  %s766 = sld [smem:[#allocation2]]
  %v767 = vstv %s766
  %v769 = vrot.slane %v21, 3
  %v770 = vsel %vm469, %v769, 0
  %v773 = vsel %vm469, %v750, 0
  %v776 = vsel %vm469, %v751, 0
  %v779 = vsel %vm469, %v752, 0
  %v782 = vsel %vm469, %v753, 0
  %v785 = vsel %vm469, %v754, 0
  %v788 = vsel %vm469, %v755, 0
  %v791 = vsel %vm469, %v756, 0
  %v794 = vsel %vm469, %v757, 0
  %v797 = vsel %vm469, %v758, 0
  %v800 = vsel %vm469, %v759, 0
  %v803 = vsel %vm469, %v760, 0
  %v806 = vsel %vm469, %v761, 0
  %v809 = vsel %vm469, %v762, 0
  %v812 = vsel %vm469, %v763, 0
  %v815 = vsel %vm469, %v764, 0
  %v818 = vsel %vm469, %v765, 0
  %820 = vmatprep.subr.mxu0 0.0
  %821 = vmatpush1.xpose.msra.mxu0 %v773
  %822 = vmatprep.subr.mxu0 0.0
  %823 = vmatpush1.xpose.msra.mxu0 %v776
  %824 = vmatprep.subr.mxu0 0.0
  %825 = vmatpush1.xpose.msra.mxu0 %v779
  %826 = vmatprep.subr.mxu0 0.0
  %827 = vmatpush1.xpose.msra.mxu0 %v782
  %828 = vmatprep.subr.mxu0 0.0
  %829 = vmatpush1.xpose.msra.mxu0 %v785
  %830 = vmatprep.subr.mxu0 0.0
  %831 = vmatpush1.xpose.msra.mxu0 %v788
  %832 = vmatprep.subr.mxu0 0.0
  %833 = vmatpush1.xpose.msra.mxu0 %v791
  %834 = vmatprep.subr.mxu0 0.0
  %835 = vmatpush1.xpose.msra.mxu0 %v794
  %836 = vmatprep.subr.mxu0 0.0
  %837 = vmatpush1.xpose.msra.mxu0 %v797
  %838 = vmatprep.subr.mxu0 0.0
  %839 = vmatpush1.xpose.msra.mxu0 %v800
  %840 = vmatprep.subr.mxu0 0.0
  %841 = vmatpush1.xpose.msra.mxu0 %v803
  %842 = vmatprep.subr.mxu0 0.0
  %843 = vmatpush1.xpose.msra.mxu0 %v806
  %844 = vmatprep.subr.mxu0 0.0
  %845 = vmatpush1.xpose.msra.mxu0 %v809
  %846 = vmatprep.subr.mxu0 0.0
  %847 = vmatpush1.xpose.msra.mxu0 %v812
  %848 = vmatprep.subr.mxu0 0.0
  %849 = vmatpush1.xpose.msra.mxu0 %v815
  %850 = vmatprep.subr.mxu0 0.0
  %851 = vmatpush1.xpose.msra.mxu0 %v818
  %852 = vmatprep.subr.mxu0 0.0
  %853 = vmatpush1.xpose.msra.mxu0 0.0
  %854 = vmatprep.subr.mxu0 0.0
  %855 = vmatpush1.xpose.msra.mxu0 0.0
  %856 = vmatprep.subr.mxu0 0.0
  %857 = vmatpush1.xpose.msra.mxu0 0.0
  %858 = vmatprep.subr.mxu0 0.0
  %859 = vmatpush1.xpose.msra.mxu0 0.0
  %860 = vmatprep.subr.mxu0 0.0
  %861 = vmatpush1.xpose.msra.mxu0 0.0
  %862 = vmatprep.subr.mxu0 0.0
  %863 = vmatpush1.xpose.msra.mxu0 0.0
  %864 = vmatprep.subr.mxu0 0.0
  %865 = vmatpush1.xpose.msra.mxu0 0.0
  %866 = vmatprep.subr.mxu0 0.0
  %867 = vmatpush1.xpose.msra.mxu0 0.0
  %868 = vmatprep.subr.mxu0 0.0
  %869 = vmatpush1.xpose.msra.mxu0 0.0
  %870 = vmatprep.subr.mxu0 0.0
  %871 = vmatpush1.xpose.msra.mxu0 0.0
  %872 = vmatprep.subr.mxu0 0.0
  %873 = vmatpush1.xpose.msra.mxu0 0.0
  %874 = vmatprep.subr.mxu0 0.0
  %875 = vmatpush1.xpose.msra.mxu0 0.0
  %876 = vmatprep.subr.mxu0 0.0
  %877 = vmatpush1.xpose.msra.mxu0 0.0
  %878 = vmatprep.subr.mxu0 0.0
  %879 = vmatpush1.xpose.msra.mxu0 0.0
  %880 = vmatprep.subr.mxu0 0.0
  %881 = vmatpush1.xpose.msra.mxu0 0.0
  %882 = vmatprep.subr.mxu0 0.0
  %883 = vmatpush1.xpose.msra.mxu0 0.0
  %884 = vmatprep.mubr.f32.mxu0 0.0
  %885 = vmatmul.mubr.f32.gmra.mrb[0].mxu0 %v770
  %v886 = vpop.f32.mrb[0].mxu0
  %v887 = vadd.f32 %v767, %v886
  %v888 = vpop.f32.mrb[0].mxu0
  %889 = vdwg.mxu0
  %890 = vst [vmem:[%s5] sm:$0x1] %v887
  // Predicated region
  $region22: #{literal_embeddings_clifford_forward.1} parent=0 // pred_check
    _
  $region23: #{literal_embeddings_clifford_forward.1} parent=0 // pred_check_branch
    %892 = sbr.rel (0) target = $region25
  $region24: #{literal_embeddings_clifford_forward.1} parent=0 // pred_region
    _
  $region25: #{literal_embeddings_clifford_forward.1} parent=0 // pred_fallthru
    _
  // Predicated region
  $region26: #{literal_embeddings_clifford_forward.1} parent=0 // pred_check
    _
  $region27: #{literal_embeddings_clifford_forward.1} parent=0 // pred_check_branch
    %894 = sbr.rel (0) target = $region29
  $region28: #{literal_embeddings_clifford_forward.1} parent=0 // pred_region
    _
  $region29: #{literal_embeddings_clifford_forward.1} parent=0 // pred_fallthru
    _

// kernel: literal_embeddings_clifford_forward.1
$region0: #{literal_embeddings_clifford_forward.1}
  #allocation0 [shape = 'u32[]', space=smem, size = 0x4, offset = 0x4, fixed_abs, tag = 'smem constant byte address 0x4 - core index']
  #allocation1 [shape = 'u32[144,128]{1,0:T(1,128)}', space=vmem, size = 0x12000, scoped, tag = 'internal scratch']
  #allocation2 [shape = 'f32[1,1]{1,0:T(1,128)S(6)}', space=smem, size = 0x200, scoped, tag = 'scoped memory for literal_embeddings_clifford_forward.1']
  %s0 = inlined_call_operand.vmem [shape: f32[128,32], index: 0, kind: input, shape index: {}]
  %s1 = inlined_call_operand.vmem [shape: f32[128,32], index: 1, kind: input, shape index: {}]
  %s2 = inlined_call_operand.vmem [shape: f32[64,64], index: 2, kind: input, shape index: {}]
  %s3 = inlined_call_operand.vmem [shape: f32[4,64], index: 3, kind: input, shape index: {}]
  %s4 = inlined_call_operand.<no memory space> [shape: f32[1,1], index: 4, kind: input, shape index: {}]
  %s5 = inlined_call_operand.vmem [shape: f32[1,128], index: 5, kind: output, shape index: {}]
  %s6 = sld [smem:[#allocation0]]
  $region30: #{literal_embeddings_clifford_forward.1} parent=0
    _
  %s8 = ssub.s32 1, %s6
  %s9 = scalar_select 0, %s8, %s6
  %10 = sst [smem:[#allocation2]] %s4
  // Predicated region
  $region2: #{literal_embeddings_clifford_forward.1} parent=0 // pred_check
    _
  $region3: #{literal_embeddings_clifford_forward.1} parent=0 // pred_check_branch
    %12 = sbr.rel (0) target = $region5
  $region4: #{literal_embeddings_clifford_forward.1} parent=0 // pred_region
    _
  $region5: #{literal_embeddings_clifford_forward.1} parent=0 // pred_fallthru
    _
  // Predicated region
  $region6: #{literal_embeddings_clifford_forward.1} parent=0 // pred_check
    _
  $region7: #{literal_embeddings_clifford_forward.1} parent=0 // pred_check_branch
    %14 = sbr.rel (0) target = $region9
  $region8: #{literal_embeddings_clifford_forward.1} parent=0 // pred_region
    _
  $region9: #{literal_embeddings_clifford_forward.1} parent=0 // pred_fallthru
    _
  // Predicated region
  $region10: #{literal_embeddings_clifford_forward.1} parent=0 // pred_check
    _
  $region11: #{literal_embeddings_clifford_forward.1} parent=0 // pred_check_branch
    %16 = sbr.rel (0) target = $region13
  $region12: #{literal_embeddings_clifford_forward.1} parent=0 // pred_region
    _
  $region13: #{literal_embeddings_clifford_forward.1} parent=0 // pred_fallthru
    _
  // Predicated region
  $region14: #{literal_embeddings_clifford_forward.1} parent=0 // pred_check
    _
  $region15: #{literal_embeddings_clifford_forward.1} parent=0 // pred_check_branch
    %18 = sbr.rel (0) target = $region17
  $region16: #{literal_embeddings_clifford_forward.1} parent=0 // pred_region
    _
  $region17: #{literal_embeddings_clifford_forward.1} parent=0 // pred_fallthru
    _
  // Predicated region
  $region18: #{literal_embeddings_clifford_forward.1} parent=0 // pred_check
    _
  $region19: #{literal_embeddings_clifford_forward.1} parent=0 // pred_check_branch
    %20 = sbr.rel (0) target = $region21
  $region20: #{literal_embeddings_clifford_forward.1} parent=0 // pred_region
    _
  $region21: #{literal_embeddings_clifford_forward.1} parent=0 // pred_fallthru
    _
  %v21 = vld [vmem:[%s3] sm:$0xf]
  %v22 = vld [vmem:[%s0] sm:$0xff]
  %v23 = vld [vmem:[%s0 + $0x8] sm:$0xff]
  %v24 = vld [vmem:[%s0 + $0x10] sm:$0xff]
  %v25 = vld [vmem:[%s0 + $0x18] sm:$0xff]
  %v26 = vld [vmem:[%s0 + $0x20] sm:$0xff]
  %v27 = vld [vmem:[%s0 + $0x28] sm:$0xff]
  %v28 = vld [vmem:[%s0 + $0x30] sm:$0xff]
  %v29 = vld [vmem:[%s0 + $0x38] sm:$0xff]
  %v30 = vld [vmem:[%s0 + $0x40] sm:$0xff]
  %v31 = vld [vmem:[%s0 + $0x48] sm:$0xff]
  %v32 = vld [vmem:[%s0 + $0x50] sm:$0xff]
  %v33 = vld [vmem:[%s0 + $0x58] sm:$0xff]
  %v34 = vld [vmem:[%s0 + $0x60] sm:$0xff]
  %v35 = vld [vmem:[%s0 + $0x68] sm:$0xff]
  %v36 = vld [vmem:[%s0 + $0x70] sm:$0xff]
  %v37 = vld [vmem:[%s0 + $0x78] sm:$0xff]
  %v38 = vld [vmem:[%s2] sm:$0xff]
  %v39 = vld [vmem:[%s2 + $0x8] sm:$0xff]
  %v40 = vld [vmem:[%s2 + $0x10] sm:$0xff]
  %v41 = vld [vmem:[%s2 + $0x18] sm:$0xff]
  %v42 = vld [vmem:[%s1] sm:$0xff]
  %v43 = vld [vmem:[%s1 + $0x8] sm:$0xff]
  %v44 = vld [vmem:[%s1 + $0x10] sm:$0xff]
  %v45 = vld [vmem:[%s1 + $0x18] sm:$0xff]
  %v46 = vld [vmem:[%s1 + $0x20] sm:$0xff]
  %v47 = vld [vmem:[%s1 + $0x28] sm:$0xff]
  %v48 = vld [vmem:[%s1 + $0x30] sm:$0xff]
  %v49 = vld [vmem:[%s1 + $0x38] sm:$0xff]
  %v50 = vld [vmem:[%s1 + $0x40] sm:$0xff]
  %v51 = vld [vmem:[%s1 + $0x48] sm:$0xff]
  %v52 = vld [vmem:[%s1 + $0x50] sm:$0xff]
  %v53 = vld [vmem:[%s1 + $0x58] sm:$0xff]
  %v54 = vld [vmem:[%s1 + $0x60] sm:$0xff]
  %v55 = vld [vmem:[%s1 + $0x68] sm:$0xff]
  %v56 = vld [vmem:[%s1 + $0x70] sm:$0xff]
  %v57 = vld [vmem:[%s1 + $0x78] sm:$0xff]
  %v58 = vld [vmem:[%s2 + $0x20] sm:$0xff]
  %v59 = vld [vmem:[%s2 + $0x28] sm:$0xff]
  %v60 = vld [vmem:[%s2 + $0x30] sm:$0xff]
  %v61 = vld [vmem:[%s2 + $0x38] sm:$0xff]
  %vm62 = vcmask 261120
  %v64 = vsel %vm62, %v42, 0
  %v67 = vsel %vm62, %v43, 0
  %v70 = vsel %vm62, %v44, 0
  %v73 = vsel %vm62, %v45, 0
  %v76 = vsel %vm62, %v46, 0
  %v79 = vsel %vm62, %v47, 0
  %v82 = vsel %vm62, %v48, 0
  %v85 = vsel %vm62, %v49, 0
  %v88 = vsel %vm62, %v50, 0
  %v91 = vsel %vm62, %v51, 0
  %v94 = vsel %vm62, %v52, 0
  %v97 = vsel %vm62, %v53, 0
  %v100 = vsel %vm62, %v54, 0
  %v103 = vsel %vm62, %v55, 0
  %v106 = vsel %vm62, %v56, 0
  %v109 = vsel %vm62, %v57, 0
  %111 = vmatprep.subr.mxu0 0.0
  %112 = vmatpush1.msra.mxu0 %v58
  %113 = vmatprep.subr.mxu0 0.0
  %114 = vmatpush1.msra.mxu0 %v59
  %115 = vmatprep.subr.mxu0 0.0
  %116 = vmatpush1.msra.mxu0 %v60
  %117 = vmatprep.subr.mxu0 0.0
  %118 = vmatpush1.msra.mxu0 %v61
  %119 = vmatprep.subr.mxu0 0.0
  %120 = vmatpush1.msra.mxu0 0.0
  %121 = vmatprep.subr.mxu0 0.0
  %122 = vmatpush1.msra.mxu0 0.0
  %123 = vmatprep.subr.mxu0 0.0
  %124 = vmatpush1.msra.mxu0 0.0
  %125 = vmatprep.subr.mxu0 0.0
  %126 = vmatpush1.msra.mxu0 0.0
  %127 = vmatprep.subr.mxu0 0.0
  %128 = vmatpush1.msra.mxu0 0.0
  %129 = vmatprep.subr.mxu0 0.0
  %130 = vmatpush1.msra.mxu0 0.0
  %131 = vmatprep.subr.mxu0 0.0
  %132 = vmatpush1.msra.mxu0 0.0
  %133 = vmatprep.subr.mxu0 0.0
  %134 = vmatpush1.msra.mxu0 0.0
  %135 = vmatprep.subr.mxu0 0.0
  %136 = vmatpush1.msra.mxu0 0.0
  %137 = vmatprep.subr.mxu0 0.0
  %138 = vmatpush1.msra.mxu0 0.0
  %139 = vmatprep.subr.mxu0 0.0
  %140 = vmatpush1.msra.mxu0 0.0
  %141 = vmatprep.subr.mxu0 0.0
  %142 = vmatpush1.msra.mxu0 0.0
  %143 = vmatprep.subr.mxu0 0.0
  %144 = vmatpush1.msra.mxu0 0.0
  %145 = vmatprep.subr.mxu0 0.0
  %146 = vmatpush1.msra.mxu0 0.0
  %147 = vmatprep.subr.mxu0 0.0
  %148 = vmatpush1.msra.mxu0 0.0
  %149 = vmatprep.subr.mxu0 0.0
  %150 = vmatpush1.msra.mxu0 0.0
  %151 = vmatprep.subr.mxu0 0.0
  %152 = vmatpush1.msra.mxu0 0.0
  %153 = vmatprep.subr.mxu0 0.0
  %154 = vmatpush1.msra.mxu0 0.0
  %155 = vmatprep.subr.mxu0 0.0
  %156 = vmatpush1.msra.mxu0 0.0
  %157 = vmatprep.subr.mxu0 0.0
  %158 = vmatpush1.msra.mxu0 0.0
  %159 = vmatprep.subr.mxu0 0.0
  %160 = vmatpush1.msra.mxu0 0.0
  %161 = vmatprep.subr.mxu0 0.0
  %162 = vmatpush1.msra.mxu0 0.0
  %163 = vmatprep.subr.mxu0 0.0
  %164 = vmatpush1.msra.mxu0 0.0
  %165 = vmatprep.subr.mxu0 0.0
  %166 = vmatpush1.msra.mxu0 0.0
  %167 = vmatprep.subr.mxu0 0.0
  %168 = vmatpush1.msra.mxu0 0.0
  %169 = vmatprep.subr.mxu0 0.0
  %170 = vmatpush1.msra.mxu0 0.0
  %171 = vmatprep.subr.mxu0 0.0
  %172 = vmatpush1.msra.mxu0 0.0
  %173 = vmatprep.subr.mxu0 0.0
  %174 = vmatpush1.msra.mxu0 0.0
  %175 = vmatprep.mubr.f32.mxu0 0.0
  %176 = vmatmul.mubr.f32.gmra.mrb[0].mxu0 %v64
  %v177 = vpop.f32.mrb[0].mxu0
  %v178 = vadd.f32 0.0, %v177
  %v179 = vpop.f32.mrb[0].mxu0
  %180 = vmatprep.mubr.f32.mxu0 0.0
  %181 = vmatmul.mubr.f32.gmra.mrb[0].mxu0 %v67
  %v182 = vpop.f32.mrb[0].mxu0
  %v183 = vadd.f32 0.0, %v182
  %v184 = vpop.f32.mrb[0].mxu0
  %185 = vmatprep.mubr.f32.mxu0 0.0
  %186 = vmatmul.mubr.f32.gmra.mrb[0].mxu0 %v70
  %v187 = vpop.f32.mrb[0].mxu0
  %v188 = vadd.f32 0.0, %v187
  %v189 = vpop.f32.mrb[0].mxu0
  %190 = vmatprep.mubr.f32.mxu0 0.0
  %191 = vmatmul.mubr.f32.gmra.mrb[0].mxu0 %v73
  %v192 = vpop.f32.mrb[0].mxu0
  %v193 = vadd.f32 0.0, %v192
  %v194 = vpop.f32.mrb[0].mxu0
  %195 = vmatprep.mubr.f32.mxu0 0.0
  %196 = vmatmul.mubr.f32.gmra.mrb[0].mxu0 %v76
  %v197 = vpop.f32.mrb[0].mxu0
  %v198 = vadd.f32 0.0, %v197
  %v199 = vpop.f32.mrb[0].mxu0
  %200 = vmatprep.mubr.f32.mxu0 0.0
  %201 = vmatmul.mubr.f32.gmra.mrb[0].mxu0 %v79
  %v202 = vpop.f32.mrb[0].mxu0
  %v203 = vadd.f32 0.0, %v202
  %v204 = vpop.f32.mrb[0].mxu0
  %205 = vmatprep.mubr.f32.mxu0 0.0
  %206 = vmatmul.mubr.f32.gmra.mrb[0].mxu0 %v82
  %v207 = vpop.f32.mrb[0].mxu0
  %v208 = vadd.f32 0.0, %v207
  %v209 = vpop.f32.mrb[0].mxu0
  %210 = vmatprep.mubr.f32.mxu0 0.0
  %211 = vmatmul.mubr.f32.gmra.mrb[0].mxu0 %v85
  %v212 = vpop.f32.mrb[0].mxu0
  %v213 = vadd.f32 0.0, %v212
  %v214 = vpop.f32.mrb[0].mxu0
  %215 = vmatprep.mubr.f32.mxu0 0.0
  %216 = vmatmul.mubr.f32.gmra.mrb[0].mxu0 %v88
  %v217 = vpop.f32.mrb[0].mxu0
  %v218 = vadd.f32 0.0, %v217
  %v219 = vpop.f32.mrb[0].mxu0
  %220 = vmatprep.mubr.f32.mxu0 0.0
  %221 = vmatmul.mubr.f32.gmra.mrb[0].mxu0 %v91
  %v222 = vpop.f32.mrb[0].mxu0
  %v223 = vadd.f32 0.0, %v222
  %v224 = vpop.f32.mrb[0].mxu0
  %225 = vmatprep.mubr.f32.mxu0 0.0
  %226 = vmatmul.mubr.f32.gmra.mrb[0].mxu0 %v94
  %v227 = vpop.f32.mrb[0].mxu0
  %v228 = vadd.f32 0.0, %v227
  %v229 = vpop.f32.mrb[0].mxu0
  %230 = vmatprep.mubr.f32.mxu0 0.0
  %231 = vmatmul.mubr.f32.gmra.mrb[0].mxu0 %v97
  %v232 = vpop.f32.mrb[0].mxu0
  %v233 = vadd.f32 0.0, %v232
  %v234 = vpop.f32.mrb[0].mxu0
  %235 = vmatprep.mubr.f32.mxu0 0.0
  %236 = vmatmul.mubr.f32.gmra.mrb[0].mxu0 %v100
  %v237 = vpop.f32.mrb[0].mxu0
  %v238 = vadd.f32 0.0, %v237
  %v239 = vpop.f32.mrb[0].mxu0
  %240 = vmatprep.mubr.f32.mxu0 0.0
  %241 = vmatmul.mubr.f32.gmra.mrb[0].mxu0 %v103
  %v242 = vpop.f32.mrb[0].mxu0
  %v243 = vadd.f32 0.0, %v242
  %v244 = vpop.f32.mrb[0].mxu0
  %245 = vmatprep.mubr.f32.mxu0 0.0
  %246 = vmatmul.mubr.f32.gmra.mrb[0].mxu0 %v106
  %v247 = vpop.f32.mrb[0].mxu0
  %v248 = vadd.f32 0.0, %v247
  %v249 = vpop.f32.mrb[0].mxu0
  %250 = vmatprep.mubr.f32.mxu0 0.0
  %251 = vmatmul.mubr.f32.gmra.mrb[0].mxu0 %v109
  %v252 = vpop.f32.mrb[0].mxu0
  %v253 = vadd.f32 0.0, %v252
  %v254 = vpop.f32.mrb[0].mxu0
  %255 = vdwg.mxu0
  %v257 = vsel %vm62, %v22, 0
  %v260 = vsel %vm62, %v23, 0
  %v263 = vsel %vm62, %v24, 0
  %v266 = vsel %vm62, %v25, 0
  %v269 = vsel %vm62, %v26, 0
  %v272 = vsel %vm62, %v27, 0
  %v275 = vsel %vm62, %v28, 0
  %v278 = vsel %vm62, %v29, 0
  %v281 = vsel %vm62, %v30, 0
  %v284 = vsel %vm62, %v31, 0
  %v287 = vsel %vm62, %v32, 0
  %v290 = vsel %vm62, %v33, 0
  %v293 = vsel %vm62, %v34, 0
  %v296 = vsel %vm62, %v35, 0
  %v299 = vsel %vm62, %v36, 0
  %v302 = vsel %vm62, %v37, 0
  %304 = vmatprep.subr.mxu0 0.0
  %305 = vmatpush1.msra.mxu0 %v38
  %306 = vmatprep.subr.mxu0 0.0
  %307 = vmatpush1.msra.mxu0 %v39
  %308 = vmatprep.subr.mxu0 0.0
  %309 = vmatpush1.msra.mxu0 %v40
  %310 = vmatprep.subr.mxu0 0.0
  %311 = vmatpush1.msra.mxu0 %v41
  %312 = vmatprep.subr.mxu0 0.0
  %313 = vmatpush1.msra.mxu0 0.0
  %314 = vmatprep.subr.mxu0 0.0
  %315 = vmatpush1.msra.mxu0 0.0
  %316 = vmatprep.subr.mxu0 0.0
  %317 = vmatpush1.msra.mxu0 0.0
  %318 = vmatprep.subr.mxu0 0.0
  %319 = vmatpush1.msra.mxu0 0.0
  %320 = vmatprep.subr.mxu0 0.0
  %321 = vmatpush1.msra.mxu0 0.0
  %322 = vmatprep.subr.mxu0 0.0
  %323 = vmatpush1.msra.mxu0 0.0
  %324 = vmatprep.subr.mxu0 0.0
  %325 = vmatpush1.msra.mxu0 0.0
  %326 = vmatprep.subr.mxu0 0.0
  %327 = vmatpush1.msra.mxu0 0.0
  %328 = vmatprep.subr.mxu0 0.0
  %329 = vmatpush1.msra.mxu0 0.0
  %330 = vmatprep.subr.mxu0 0.0
  %331 = vmatpush1.msra.mxu0 0.0
  %332 = vmatprep.subr.mxu0 0.0
  %333 = vmatpush1.msra.mxu0 0.0
  %334 = vmatprep.subr.mxu0 0.0
  %335 = vmatpush1.msra.mxu0 0.0
  %336 = vmatprep.subr.mxu0 0.0
  %337 = vmatpush1.msra.mxu0 0.0
  %338 = vmatprep.subr.mxu0 0.0
  %339 = vmatpush1.msra.mxu0 0.0
  %340 = vmatprep.subr.mxu0 0.0
  %341 = vmatpush1.msra.mxu0 0.0
  %342 = vmatprep.subr.mxu0 0.0
  %343 = vmatpush1.msra.mxu0 0.0
  %344 = vmatprep.subr.mxu0 0.0
  %345 = vmatpush1.msra.mxu0 0.0
  %346 = vmatprep.subr.mxu0 0.0
  %347 = vmatpush1.msra.mxu0 0.0
  %348 = vmatprep.subr.mxu0 0.0
  %349 = vmatpush1.msra.mxu0 0.0
  %350 = vmatprep.subr.mxu0 0.0
  %351 = vmatpush1.msra.mxu0 0.0
  %352 = vmatprep.subr.mxu0 0.0
  %353 = vmatpush1.msra.mxu0 0.0
  %354 = vmatprep.subr.mxu0 0.0
  %355 = vmatpush1.msra.mxu0 0.0
  %356 = vmatprep.subr.mxu0 0.0
  %357 = vmatpush1.msra.mxu0 0.0
  %358 = vmatprep.subr.mxu0 0.0
  %359 = vmatpush1.msra.mxu0 0.0
  %360 = vmatprep.subr.mxu0 0.0
  %361 = vmatpush1.msra.mxu0 0.0
  %362 = vmatprep.subr.mxu0 0.0
  %363 = vmatpush1.msra.mxu0 0.0
  %364 = vmatprep.subr.mxu0 0.0
  %365 = vmatpush1.msra.mxu0 0.0
  %366 = vmatprep.subr.mxu0 0.0
  %367 = vmatpush1.msra.mxu0 0.0
  %368 = vmatprep.mubr.f32.mxu0 0.0
  %369 = vmatmul.mubr.f32.gmra.mrb[0].mxu0 %v257
  %v370 = vpop.f32.mrb[0].mxu0
  %v371 = vadd.f32 %v178, %v370
  %v372 = vpop.f32.mrb[0].mxu0
  %373 = vmatprep.mubr.f32.mxu0 0.0
  %374 = vmatmul.mubr.f32.gmra.mrb[0].mxu0 %v260
  %v375 = vpop.f32.mrb[0].mxu0
  %v376 = vadd.f32 %v183, %v375
  %v377 = vpop.f32.mrb[0].mxu0
  %378 = vmatprep.mubr.f32.mxu0 0.0
  %379 = vmatmul.mubr.f32.gmra.mrb[0].mxu0 %v263
  %v380 = vpop.f32.mrb[0].mxu0
  %v381 = vadd.f32 %v188, %v380
  %v382 = vpop.f32.mrb[0].mxu0
  %383 = vmatprep.mubr.f32.mxu0 0.0
  %384 = vmatmul.mubr.f32.gmra.mrb[0].mxu0 %v266
  %v385 = vpop.f32.mrb[0].mxu0
  %v386 = vadd.f32 %v193, %v385
  %v387 = vpop.f32.mrb[0].mxu0
  %388 = vmatprep.mubr.f32.mxu0 0.0
  %389 = vmatmul.mubr.f32.gmra.mrb[0].mxu0 %v269
  %v390 = vpop.f32.mrb[0].mxu0
  %v391 = vadd.f32 %v198, %v390
  %v392 = vpop.f32.mrb[0].mxu0
  %393 = vmatprep.mubr.f32.mxu0 0.0
  %394 = vmatmul.mubr.f32.gmra.mrb[0].mxu0 %v272
  %v395 = vpop.f32.mrb[0].mxu0
  %v396 = vadd.f32 %v203, %v395
  %v397 = vpop.f32.mrb[0].mxu0
  %398 = vmatprep.mubr.f32.mxu0 0.0
  %399 = vmatmul.mubr.f32.gmra.mrb[0].mxu0 %v275
  %v400 = vpop.f32.mrb[0].mxu0
  %v401 = vadd.f32 %v208, %v400
  %v402 = vpop.f32.mrb[0].mxu0
  %403 = vmatprep.mubr.f32.mxu0 0.0
  %404 = vmatmul.mubr.f32.gmra.mrb[0].mxu0 %v278
  %v405 = vpop.f32.mrb[0].mxu0
  %v406 = vadd.f32 %v213, %v405
  %v407 = vpop.f32.mrb[0].mxu0
  %408 = vmatprep.mubr.f32.mxu0 0.0
  %409 = vmatmul.mubr.f32.gmra.mrb[0].mxu0 %v281
  %v410 = vpop.f32.mrb[0].mxu0
  %v411 = vadd.f32 %v218, %v410
  %v412 = vpop.f32.mrb[0].mxu0
  %413 = vmatprep.mubr.f32.mxu0 0.0
  %414 = vmatmul.mubr.f32.gmra.mrb[0].mxu0 %v284
  %v415 = vpop.f32.mrb[0].mxu0
  %v416 = vadd.f32 %v223, %v415
  %v417 = vpop.f32.mrb[0].mxu0
  %418 = vmatprep.mubr.f32.mxu0 0.0
  %419 = vmatmul.mubr.f32.gmra.mrb[0].mxu0 %v287
  %v420 = vpop.f32.mrb[0].mxu0
  %v421 = vadd.f32 %v228, %v420
  %v422 = vpop.f32.mrb[0].mxu0
  %423 = vmatprep.mubr.f32.mxu0 0.0
  %424 = vmatmul.mubr.f32.gmra.mrb[0].mxu0 %v290
  %v425 = vpop.f32.mrb[0].mxu0
  %v426 = vadd.f32 %v233, %v425
  %v427 = vpop.f32.mrb[0].mxu0
  %428 = vmatprep.mubr.f32.mxu0 0.0
  %429 = vmatmul.mubr.f32.gmra.mrb[0].mxu0 %v293
  %v430 = vpop.f32.mrb[0].mxu0
  %v431 = vadd.f32 %v238, %v430
  %v432 = vpop.f32.mrb[0].mxu0
  %433 = vmatprep.mubr.f32.mxu0 0.0
  %434 = vmatmul.mubr.f32.gmra.mrb[0].mxu0 %v296
  %v435 = vpop.f32.mrb[0].mxu0
  %v436 = vadd.f32 %v243, %v435
  %v437 = vpop.f32.mrb[0].mxu0
  %438 = vmatprep.mubr.f32.mxu0 0.0
  %439 = vmatmul.mubr.f32.gmra.mrb[0].mxu0 %v299
  %v440 = vpop.f32.mrb[0].mxu0
  %v441 = vadd.f32 %v248, %v440
  %v442 = vpop.f32.mrb[0].mxu0
  %443 = vmatprep.mubr.f32.mxu0 0.0
  %444 = vmatmul.mubr.f32.gmra.mrb[0].mxu0 %v302
  %v445 = vpop.f32.mrb[0].mxu0
  %v446 = vadd.f32 %v253, %v445
  %v447 = vpop.f32.mrb[0].mxu0
  %448 = vdwg.mxu0
  %v449 = vlaneseq
  %v450 = vshrl.u32 %v449, 7
  %v451 = vsub.s32 0, %v450
  %v452 = vrot.slane %v21, %v451
  %v453 = vadd.f32 %v371, %v452
  %v454 = vadd.f32 %v376, %v452
  %v455 = vadd.f32 %v381, %v452
  %v456 = vadd.f32 %v386, %v452
  %v457 = vadd.f32 %v391, %v452
  %v458 = vadd.f32 %v396, %v452
  %v459 = vadd.f32 %v401, %v452
  %v460 = vadd.f32 %v406, %v452
  %v461 = vadd.f32 %v411, %v452
  %v462 = vadd.f32 %v416, %v452
  %v463 = vadd.f32 %v421, %v452
  %v464 = vadd.f32 %v426, %v452
  %v465 = vadd.f32 %v431, %v452
  %v466 = vadd.f32 %v436, %v452
  %v467 = vadd.f32 %v441, %v452
  %v468 = vadd.f32 %v446, %v452
  %vm469 = vcmask 523264
  %v470 = vsel %vm469, %v453, 0.0
  %471 = vadd.xlane.f32.xlu0 %v470
  %v472 = vpop.xlane.xlu0 %471
  %v473 = vsel %vm469, %v454, 0.0
  %474 = vadd.xlane.f32.xlu0 %v473
  %v475 = vpop.xlane.xlu0 %474
  %v476 = vsel %vm469, %v455, 0.0
  %477 = vadd.xlane.f32.xlu0 %v476
  %v478 = vpop.xlane.xlu0 %477
  %v479 = vsel %vm469, %v456, 0.0
  %480 = vadd.xlane.f32.xlu0 %v479
  %v481 = vpop.xlane.xlu0 %480
  %v482 = vsel %vm469, %v457, 0.0
  %483 = vadd.xlane.f32.xlu0 %v482
  %v484 = vpop.xlane.xlu0 %483
  %v485 = vsel %vm469, %v458, 0.0
  %486 = vadd.xlane.f32.xlu0 %v485
  %v487 = vpop.xlane.xlu0 %486
  %v488 = vsel %vm469, %v459, 0.0
  %489 = vadd.xlane.f32.xlu0 %v488
  %v490 = vpop.xlane.xlu0 %489
  %v491 = vsel %vm469, %v460, 0.0
  %492 = vadd.xlane.f32.xlu0 %v491
  %v493 = vpop.xlane.xlu0 %492
  %v494 = vsel %vm469, %v461, 0.0
  %495 = vadd.xlane.f32.xlu0 %v494
  %v496 = vpop.xlane.xlu0 %495
  %v497 = vsel %vm469, %v462, 0.0
  %498 = vadd.xlane.f32.xlu0 %v497
  %v499 = vpop.xlane.xlu0 %498
  %v500 = vsel %vm469, %v463, 0.0
  %501 = vadd.xlane.f32.xlu0 %v500
  %v502 = vpop.xlane.xlu0 %501
  %v503 = vsel %vm469, %v464, 0.0
  %504 = vadd.xlane.f32.xlu0 %v503
  %v505 = vpop.xlane.xlu0 %504
  %v506 = vsel %vm469, %v465, 0.0
  %507 = vadd.xlane.f32.xlu0 %v506
  %v508 = vpop.xlane.xlu0 %507
  %v509 = vsel %vm469, %v466, 0.0
  %510 = vadd.xlane.f32.xlu0 %v509
  %v511 = vpop.xlane.xlu0 %510
  %v512 = vsel %vm469, %v467, 0.0
  %513 = vadd.xlane.f32.xlu0 %v512
  %v514 = vpop.xlane.xlu0 %513
  %v515 = vsel %vm469, %v468, 0.0
  %516 = vadd.xlane.f32.xlu0 %v515
  %v517 = vpop.xlane.xlu0 %516
  %v518 = vmul.f32 %v453, %v453
  %v519 = vmul.f32 %v454, %v454
  %v520 = vmul.f32 %v455, %v455
  %v521 = vmul.f32 %v456, %v456
  %v522 = vmul.f32 %v457, %v457
  %v523 = vmul.f32 %v458, %v458
  %v524 = vmul.f32 %v459, %v459
  %v525 = vmul.f32 %v460, %v460
  %v526 = vmul.f32 %v461, %v461
  %v527 = vmul.f32 %v462, %v462
  %v528 = vmul.f32 %v463, %v463
  %v529 = vmul.f32 %v464, %v464
  %v530 = vmul.f32 %v465, %v465
  %v531 = vmul.f32 %v466, %v466
  %v532 = vmul.f32 %v467, %v467
  %v533 = vmul.f32 %v468, %v468
  %v534 = vsel %vm469, %v518, 0.0
  %535 = vadd.xlane.f32.xlu0 %v534
  %v536 = vpop.xlane.xlu0 %535
  %v537 = vsel %vm469, %v519, 0.0
  %538 = vadd.xlane.f32.xlu0 %v537
  %v539 = vpop.xlane.xlu0 %538
  %v540 = vsel %vm469, %v520, 0.0
  %541 = vadd.xlane.f32.xlu0 %v540
  %v542 = vpop.xlane.xlu0 %541
  %v543 = vsel %vm469, %v521, 0.0
  %544 = vadd.xlane.f32.xlu0 %v543
  %v545 = vpop.xlane.xlu0 %544
  %v546 = vsel %vm469, %v522, 0.0
  %547 = vadd.xlane.f32.xlu0 %v546
  %v548 = vpop.xlane.xlu0 %547
  %v549 = vsel %vm469, %v523, 0.0
  %550 = vadd.xlane.f32.xlu0 %v549
  %v551 = vpop.xlane.xlu0 %550
  %v552 = vsel %vm469, %v524, 0.0
  %553 = vadd.xlane.f32.xlu0 %v552
  %v554 = vpop.xlane.xlu0 %553
  %v555 = vsel %vm469, %v525, 0.0
  %556 = vadd.xlane.f32.xlu0 %v555
  %v557 = vpop.xlane.xlu0 %556
  %v558 = vsel %vm469, %v526, 0.0
  %559 = vadd.xlane.f32.xlu0 %v558
  %v560 = vpop.xlane.xlu0 %559
  %v561 = vsel %vm469, %v527, 0.0
  %562 = vadd.xlane.f32.xlu0 %v561
  %v563 = vpop.xlane.xlu0 %562
  %v564 = vsel %vm469, %v528, 0.0
  %565 = vadd.xlane.f32.xlu0 %v564
  %v566 = vpop.xlane.xlu0 %565
  %v567 = vsel %vm469, %v529, 0.0
  %568 = vadd.xlane.f32.xlu0 %v567
  %v569 = vpop.xlane.xlu0 %568
  %v570 = vsel %vm469, %v530, 0.0
  %571 = vadd.xlane.f32.xlu0 %v570
  %v572 = vpop.xlane.xlu0 %571
  %v573 = vsel %vm469, %v531, 0.0
  %574 = vadd.xlane.f32.xlu0 %v573
  %v575 = vpop.xlane.xlu0 %574
  %v576 = vsel %vm469, %v532, 0.0
  %577 = vadd.xlane.f32.xlu0 %v576
  %v578 = vpop.xlane.xlu0 %577
  %v579 = vsel %vm469, %v533, 0.0
  %580 = vadd.xlane.f32.xlu0 %v579
  %v581 = vpop.xlane.xlu0 %580
  %v582 = vmul.f32 %v472, 0.015625
  %v583 = vmul.f32 %v475, 0.015625
  %v584 = vmul.f32 %v478, 0.015625
  %v585 = vmul.f32 %v481, 0.015625
  %v586 = vmul.f32 %v484, 0.015625
  %v587 = vmul.f32 %v487, 0.015625
  %v588 = vmul.f32 %v490, 0.015625
  %v589 = vmul.f32 %v493, 0.015625
  %v590 = vmul.f32 %v496, 0.015625
  %v591 = vmul.f32 %v499, 0.015625
  %v592 = vmul.f32 %v502, 0.015625
  %v593 = vmul.f32 %v505, 0.015625
  %v594 = vmul.f32 %v508, 0.015625
  %v595 = vmul.f32 %v511, 0.015625
  %v596 = vmul.f32 %v514, 0.015625
  %v597 = vmul.f32 %v517, 0.015625
  %v598 = vmul.f32 %v536, 0.015625
  %v599 = vmul.f32 %v539, 0.015625
  %v600 = vmul.f32 %v542, 0.015625
  %v601 = vmul.f32 %v545, 0.015625
  %v602 = vmul.f32 %v548, 0.015625
  %v603 = vmul.f32 %v551, 0.015625
  %v604 = vmul.f32 %v554, 0.015625
  %v605 = vmul.f32 %v557, 0.015625
  %v606 = vmul.f32 %v560, 0.015625
  %v607 = vmul.f32 %v563, 0.015625
  %v608 = vmul.f32 %v566, 0.015625
  %v609 = vmul.f32 %v569, 0.015625
  %v610 = vmul.f32 %v572, 0.015625
  %v611 = vmul.f32 %v575, 0.015625
  %v612 = vmul.f32 %v578, 0.015625
  %v613 = vmul.f32 %v581, 0.015625
  %v614 = vmul.f32 %v582, %v582
  %v615 = vmul.f32 %v583, %v583
  %v616 = vmul.f32 %v584, %v584
  %v617 = vmul.f32 %v585, %v585
  %v618 = vmul.f32 %v586, %v586
  %v619 = vmul.f32 %v587, %v587
  %v620 = vmul.f32 %v588, %v588
  %v621 = vmul.f32 %v589, %v589
  %v622 = vmul.f32 %v590, %v590
  %v623 = vmul.f32 %v591, %v591
  %v624 = vmul.f32 %v592, %v592
  %v625 = vmul.f32 %v593, %v593
  %v626 = vmul.f32 %v594, %v594
  %v627 = vmul.f32 %v595, %v595
  %v628 = vmul.f32 %v596, %v596
  %v629 = vmul.f32 %v597, %v597
  %v630 = vsub.f32 %v598, %v614
  %v631 = vsub.f32 %v599, %v615
  %v632 = vsub.f32 %v600, %v616
  %v633 = vsub.f32 %v601, %v617
  %v634 = vsub.f32 %v602, %v618
  %v635 = vsub.f32 %v603, %v619
  %v636 = vsub.f32 %v604, %v620
  %v637 = vsub.f32 %v605, %v621
  %v638 = vsub.f32 %v606, %v622
  %v639 = vsub.f32 %v607, %v623
  %v640 = vsub.f32 %v608, %v624
  %v641 = vsub.f32 %v609, %v625
  %v642 = vsub.f32 %v610, %v626
  %v643 = vsub.f32 %v611, %v627
  %v644 = vsub.f32 %v612, %v628
  %v645 = vsub.f32 %v613, %v629
  %v646 = vsub.f32 %v453, %v582
  %v647 = vsub.f32 %v454, %v583
  %v648 = vsub.f32 %v455, %v584
  %v649 = vsub.f32 %v456, %v585
  %v650 = vsub.f32 %v457, %v586
  %v651 = vsub.f32 %v458, %v587
  %v652 = vsub.f32 %v459, %v588
  %v653 = vsub.f32 %v460, %v589
  %v654 = vsub.f32 %v461, %v590
  %v655 = vsub.f32 %v462, %v591
  %v656 = vsub.f32 %v463, %v592
  %v657 = vsub.f32 %v464, %v593
  %v658 = vsub.f32 %v465, %v594
  %v659 = vsub.f32 %v466, %v595
  %v660 = vsub.f32 %v467, %v596
  %v661 = vsub.f32 %v468, %v597
  %v662 = vadd.f32 %v630, 1e-05
  %v663 = vadd.f32 %v631, 1e-05
  %v664 = vadd.f32 %v632, 1e-05
  %v665 = vadd.f32 %v633, 1e-05
  %v666 = vadd.f32 %v634, 1e-05
  %v667 = vadd.f32 %v635, 1e-05
  %v668 = vadd.f32 %v636, 1e-05
  %v669 = vadd.f32 %v637, 1e-05
  %v670 = vadd.f32 %v638, 1e-05
  %v671 = vadd.f32 %v639, 1e-05
  %v672 = vadd.f32 %v640, 1e-05
  %v673 = vadd.f32 %v641, 1e-05
  %v674 = vadd.f32 %v642, 1e-05
  %v675 = vadd.f32 %v643, 1e-05
  %v676 = vadd.f32 %v644, 1e-05
  %v677 = vadd.f32 %v645, 1e-05
  %v678 = vrsqrt.pop %v662
  %v679 = vrsqrt.pop %v663
  %v680 = vrsqrt.pop %v664
  %v681 = vrsqrt.pop %v665
  %v682 = vrsqrt.pop %v666
  %v683 = vrsqrt.pop %v667
  %v684 = vrsqrt.pop %v668
  %v685 = vrsqrt.pop %v669
  %v686 = vrsqrt.pop %v670
  %v687 = vrsqrt.pop %v671
  %v688 = vrsqrt.pop %v672
  %v689 = vrsqrt.pop %v673
  %v690 = vrsqrt.pop %v674
  %v691 = vrsqrt.pop %v675
  %v692 = vrsqrt.pop %v676
  %v693 = vrsqrt.pop %v677
  %v694 = vmul.f32 %v646, %v678
  %v695 = vmul.f32 %v647, %v679
  %v696 = vmul.f32 %v648, %v680
  %v697 = vmul.f32 %v649, %v681
  %v698 = vmul.f32 %v650, %v682
  %v699 = vmul.f32 %v651, %v683
  %v700 = vmul.f32 %v652, %v684
  %v701 = vmul.f32 %v653, %v685
  %v702 = vmul.f32 %v654, %v686
  %v703 = vmul.f32 %v655, %v687
  %v704 = vmul.f32 %v656, %v688
  %v705 = vmul.f32 %v657, %v689
  %v706 = vmul.f32 %v658, %v690
  %v707 = vmul.f32 %v659, %v691
  %v708 = vmul.f32 %v660, %v692
  %v709 = vmul.f32 %v661, %v693
  %v710 = vlaneseq
  %v711 = vshrl.u32 %v710, 7
  %v712 = vsub.s32 1, %v711
  %v713 = vrot.slane %v21, %v712
  %v714 = vmul.f32 %v694, %v713
  %v715 = vmul.f32 %v695, %v713
  %v716 = vmul.f32 %v696, %v713
  %v717 = vmul.f32 %v697, %v713
  %v718 = vmul.f32 %v698, %v713
  %v719 = vmul.f32 %v699, %v713
  %v720 = vmul.f32 %v700, %v713
  %v721 = vmul.f32 %v701, %v713
  %v722 = vmul.f32 %v702, %v713
  %v723 = vmul.f32 %v703, %v713
  %v724 = vmul.f32 %v704, %v713
  %v725 = vmul.f32 %v705, %v713
  %v726 = vmul.f32 %v706, %v713
  %v727 = vmul.f32 %v707, %v713
  %v728 = vmul.f32 %v708, %v713
  %v729 = vmul.f32 %v709, %v713
  %v730 = vlaneseq
  %v731 = vshrl.u32 %v730, 7
  %v732 = vsub.s32 2, %v731
  %v733 = vrot.slane %v21, %v732
  %v734 = vadd.f32 %v714, %v733
  %v735 = vadd.f32 %v715, %v733
  %v736 = vadd.f32 %v716, %v733
  %v737 = vadd.f32 %v717, %v733
  %v738 = vadd.f32 %v718, %v733
  %v739 = vadd.f32 %v719, %v733
  %v740 = vadd.f32 %v720, %v733
  %v741 = vadd.f32 %v721, %v733
  %v742 = vadd.f32 %v722, %v733
  %v743 = vadd.f32 %v723, %v733
  %v744 = vadd.f32 %v724, %v733
  %v745 = vadd.f32 %v725, %v733
  %v746 = vadd.f32 %v726, %v733
  %v747 = vadd.f32 %v727, %v733
  %v748 = vadd.f32 %v728, %v733
  %v749 = vadd.f32 %v729, %v733
  %v750 = vmax.f32 %v734, 0.0
  %v751 = vmax.f32 %v735, 0.0
  %v752 = vmax.f32 %v736, 0.0
  %v753 = vmax.f32 %v737, 0.0
  %v754 = vmax.f32 %v738, 0.0
  %v755 = vmax.f32 %v739, 0.0
  %v756 = vmax.f32 %v740, 0.0
  %v757 = vmax.f32 %v741, 0.0
  %v758 = vmax.f32 %v742, 0.0
  %v759 = vmax.f32 %v743, 0.0
  %v760 = vmax.f32 %v744, 0.0
  %v761 = vmax.f32 %v745, 0.0
  %v762 = vmax.f32 %v746, 0.0
  %v763 = vmax.f32 %v747, 0.0
  %v764 = vmax.f32 %v748, 0.0
  %v765 = vmax.f32 %v749, 0.0
  %s766 = sld [smem:[#allocation2]]
  %v767 = vstv %s766
  %v769 = vrot.slane %v21, 3
  %v770 = vsel %vm469, %v769, 0
  %v773 = vsel %vm469, %v750, 0
  %v776 = vsel %vm469, %v751, 0
  %v779 = vsel %vm469, %v752, 0
  %v782 = vsel %vm469, %v753, 0
  %v785 = vsel %vm469, %v754, 0
  %v788 = vsel %vm469, %v755, 0
  %v791 = vsel %vm469, %v756, 0
  %v794 = vsel %vm469, %v757, 0
  %v797 = vsel %vm469, %v758, 0
  %v800 = vsel %vm469, %v759, 0
  %v803 = vsel %vm469, %v760, 0
  %v806 = vsel %vm469, %v761, 0
  %v809 = vsel %vm469, %v762, 0
  %v812 = vsel %vm469, %v763, 0
  %v815 = vsel %vm469, %v764, 0
  %v818 = vsel %vm469, %v765, 0
  %820 = vmatprep.subr.mxu0 0.0
  %821 = vmatpush1.xpose.msra.mxu0 %v773
  %822 = vmatprep.subr.mxu0 0.0
  %823 = vmatpush1.xpose.msra.mxu0 %v776
  %824 = vmatprep.subr.mxu0 0.0
  %825 = vmatpush1.xpose.msra.mxu0 %v779
  %826 = vmatprep.subr.mxu0 0.0
  %827 = vmatpush1.xpose.msra.mxu0 %v782
  %828 = vmatprep.subr.mxu0 0.0
  %829 = vmatpush1.xpose.msra.mxu0 %v785
  %830 = vmatprep.subr.mxu0 0.0
  %831 = vmatpush1.xpose.msra.mxu0 %v788
  %832 = vmatprep.subr.mxu0 0.0
  %833 = vmatpush1.xpose.msra.mxu0 %v791
  %834 = vmatprep.subr.mxu0 0.0
  %835 = vmatpush1.xpose.msra.mxu0 %v794
  %836 = vmatprep.subr.mxu0 0.0
  %837 = vmatpush1.xpose.msra.mxu0 %v797
  %838 = vmatprep.subr.mxu0 0.0
  %839 = vmatpush1.xpose.msra.mxu0 %v800
  %840 = vmatprep.subr.mxu0 0.0
  %841 = vmatpush1.xpose.msra.mxu0 %v803
  %842 = vmatprep.subr.mxu0 0.0
  %843 = vmatpush1.xpose.msra.mxu0 %v806
  %844 = vmatprep.subr.mxu0 0.0
  %845 = vmatpush1.xpose.msra.mxu0 %v809
  %846 = vmatprep.subr.mxu0 0.0
  %847 = vmatpush1.xpose.msra.mxu0 %v812
  %848 = vmatprep.subr.mxu0 0.0
  %849 = vmatpush1.xpose.msra.mxu0 %v815
  %850 = vmatprep.subr.mxu0 0.0
  %851 = vmatpush1.xpose.msra.mxu0 %v818
  %852 = vmatprep.subr.mxu0 0.0
  %853 = vmatpush1.xpose.msra.mxu0 0.0
  %854 = vmatprep.subr.mxu0 0.0
  %855 = vmatpush1.xpose.msra.mxu0 0.0
  %856 = vmatprep.subr.mxu0 0.0
  %857 = vmatpush1.xpose.msra.mxu0 0.0
  %858 = vmatprep.subr.mxu0 0.0
  %859 = vmatpush1.xpose.msra.mxu0 0.0
  %860 = vmatprep.subr.mxu0 0.0
  %861 = vmatpush1.xpose.msra.mxu0 0.0
  %862 = vmatprep.subr.mxu0 0.0
  %863 = vmatpush1.xpose.msra.mxu0 0.0
  %864 = vmatprep.subr.mxu0 0.0
  %865 = vmatpush1.xpose.msra.mxu0 0.0
  %866 = vmatprep.subr.mxu0 0.0
  %867 = vmatpush1.xpose.msra.mxu0 0.0
  %868 = vmatprep.subr.mxu0 0.0
  %869 = vmatpush1.xpose.msra.mxu0 0.0
  %870 = vmatprep.subr.mxu0 0.0
  %871 = vmatpush1.xpose.msra.mxu0 0.0
  %872 = vmatprep.subr.mxu0 0.0
  %873 = vmatpush1.xpose.msra.mxu0 0.0
  %874 = vmatprep.subr.mxu0 0.0
  %875 = vmatpush1.xpose.msra.mxu0 0.0
  %876 = vmatprep.subr.mxu0 0.0
  %877 = vmatpush1.xpose.msra.mxu0 0.0
  %878 = vmatprep.subr.mxu0 0.0
  %879 = vmatpush1.xpose.msra.mxu0 0.0
  %880 = vmatprep.subr.mxu0 0.0
  %881 = vmatpush1.xpose.msra.mxu0 0.0
  %882 = vmatprep.subr.mxu0 0.0
  %883 = vmatpush1.xpose.msra.mxu0 0.0
  %884 = vmatprep.mubr.f32.mxu0 0.0
  %885 = vmatmul.mubr.f32.gmra.mrb[0].mxu0 %v770
  %v886 = vpop.f32.mrb[0].mxu0
  %v887 = vadd.f32 %v767, %v886
  %v888 = vpop.f32.mrb[0].mxu0
  %889 = vdwg.mxu0
  %890 = vst [vmem:[%s5] sm:$0x1] %v887
  // Predicated region
  $region22: #{literal_embeddings_clifford_forward.1} parent=0 // pred_check
    _
  $region23: #{literal_embeddings_clifford_forward.1} parent=0 // pred_check_branch
    %892 = sbr.rel (0) target = $region25
  $region24: #{literal_embeddings_clifford_forward.1} parent=0 // pred_region
    _
  $region25: #{literal_embeddings_clifford_forward.1} parent=0 // pred_fallthru
    _
  // Predicated region
  $region26: #{literal_embeddings_clifford_forward.1} parent=0 // pred_check
    _
  $region27: #{literal_embeddings_clifford_forward.1} parent=0 // pred_check_branch
    %894 = sbr.rel (0) target = $region29
  $region28: #{literal_embeddings_clifford_forward.1} parent=0 // pred_region
    _
  $region29: #{literal_embeddings_clifford_forward.1} parent=0 // pred_fallthru
    _

</llo_original>
